<compile_context>
chip_gen: v7x
topology: tpu7x:2x2x1
jax: 0.10.0
libtpu: 0.0.40
codegen_flags: <defaults>
</compile_context>

<pallas_src>
import functools

import jax
import jax.numpy as jnp
from jax.experimental import pallas as pl
from jax.experimental.pallas import tpu as pltpu


def _round_up(x, m):
    return ((x + m - 1) // m) * m


# --------------------------------------------------------------------------
# Kernel
# --------------------------------------------------------------------------
def _gru_net_kernel(x_ref,
                    wih1_ref, whh1_ref, bih1_ref, bhh1_ref,
                    wih2_ref, whh2_ref, bih2_ref, bhh2_ref,
                    wfc_ref, bfc_ref,
                    out_ref,
                    h1_ref, h2_ref,
                    *, hp):
    """One timestep of a 2-layer GRU; fc(relu(.)) emitted at the last step."""
    t = pl.program_id(0)
    n_t = pl.num_programs(0)

    @pl.when(t == 0)
    def _():
        # GRUNet.init_hidden -> zeros
        h1_ref[...] = jnp.zeros_like(h1_ref)
        h2_ref[...] = jnp.zeros_like(h2_ref)

    def gru_cell(x, h, wih, whh, bih, bhh):
        # PyTorch GRU gate order: r, z, n  (gate axis is lane-dense, width hp)
        gi = jnp.dot(x, wih, preferred_element_type=jnp.float32) + bih
        gh = jnp.dot(h, whh, preferred_element_type=jnp.float32) + bhh
        r = jax.nn.sigmoid(gi[:, 0 * hp:1 * hp] + gh[:, 0 * hp:1 * hp])
        z = jax.nn.sigmoid(gi[:, 1 * hp:2 * hp] + gh[:, 1 * hp:2 * hp])
        n = jnp.tanh(gi[:, 2 * hp:3 * hp] + r * gh[:, 2 * hp:3 * hp])
        return (1.0 - z) * n + z * h

    x_t = x_ref[0]  # [Bp, Dp]

    h1_new = gru_cell(x_t, h1_ref[...],
                      wih1_ref[...], whh1_ref[...], bih1_ref[...], bhh1_ref[...])
    h1_ref[...] = h1_new

    h2_new = gru_cell(h1_new, h2_ref[...],
                      wih2_ref[...], whh2_ref[...], bih2_ref[...], bhh2_ref[...])
    h2_ref[...] = h2_new

    @pl.when(t == n_t - 1)
    def _():
        # out[:, -1] == fc(relu(h2 at final timestep))
        out_ref[...] = (
            jnp.dot(jnp.maximum(h2_new, 0.0), wfc_ref[...],
                    preferred_element_type=jnp.float32)
            + bfc_ref[...]
        )


# --------------------------------------------------------------------------
# Parameter prep (done ONCE): gate-wise pad + transpose into MXU-friendly
# [K, 3*Hp] layout with the gate axis on lanes.
# --------------------------------------------------------------------------
def prepare_gru_params(params, input_dim, hidden_dim, output_dim):
    hp = _round_up(hidden_dim, 128)
    dp = _round_up(input_dim, 128)
    op = _round_up(output_dim, 128)

    def pad_w(w, in_dim, in_pad):
        # w: [3H, in_dim] (gate order r,z,n) -> [in_pad, 3*Hp]
        w3 = w.reshape(3, hidden_dim, in_dim)
        w3 = jnp.pad(w3, ((0, 0), (0, hp - hidden_dim), (0, in_pad - in_dim)))
        return jnp.transpose(w3.reshape(3 * hp, in_pad))

    def pad_b(b):
        b3 = b.reshape(3, hidden_dim)
        b3 = jnp.pad(b3, ((0, 0), (0, hp - hidden_dim)))
        return b3.reshape(1, 3 * hp)

    wfc = jnp.transpose(
        jnp.pad(params["fc_w"], ((0, op - output_dim), (0, hp - hidden_dim))))
    bfc = jnp.pad(params["fc_b"], (0, op - output_dim)).reshape(1, op)

    return {
        "wih1": pad_w(params["w_ih_l0"], input_dim, dp),
        "whh1": pad_w(params["w_hh_l0"], hidden_dim, hp),
        "bih1": pad_b(params["b_ih_l0"]),
        "bhh1": pad_b(params["b_hh_l0"]),
        "wih2": pad_w(params["w_ih_l1"], hidden_dim, hp),
        "whh2": pad_w(params["w_hh_l1"], hidden_dim, hp),
        "bih2": pad_b(params["b_ih_l1"]),
        "bhh2": pad_b(params["b_hh_l1"]),
        "wfc": wfc,
        "bfc": bfc,
        "dims": (input_dim, hidden_dim, output_dim, dp, hp, op),
    }


# --------------------------------------------------------------------------
# Forward wrapper
# --------------------------------------------------------------------------
def gru_net_forward(x, prep):
    """Pallas equivalent of GRUNet.forward(x) with h=None.

    x: [B, T, input_dim] float32 -> [B, output_dim] float32
    """
    input_dim, hidden_dim, output_dim, dp, hp, op = prep["dims"]
    B, T, D = x.shape
    bp = _round_up(max(B, 8), 8)

    # per-call glue: time axis leading, pad batch to >=8 sublanes and
    # features to a full lane multiple (zeros).
    x_p = jnp.transpose(x, (1, 0, 2))                       # [T, B, D]
    x_p = jnp.pad(x_p, ((0, 0), (0, bp - B), (0, dp - D)))  # [T, Bp, Dp]

    kernel = functools.partial(_gru_net_kernel, hp=hp)
    const2 = lambda t: (0, 0)

    grid_spec = pltpu.PrefetchScalarGridSpec(
        num_scalar_prefetch=0,
        grid=(T,),
        in_specs=[
            pl.BlockSpec((1, bp, dp), lambda t: (t, 0, 0)),   # x_t
            pl.BlockSpec((dp, 3 * hp), const2),               # wih1 (resident)
            pl.BlockSpec((hp, 3 * hp), const2),               # whh1
            pl.BlockSpec((1, 3 * hp), const2),                # bih1
            pl.BlockSpec((1, 3 * hp), const2),                # bhh1
            pl.BlockSpec((hp, 3 * hp), const2),               # wih2
            pl.BlockSpec((hp, 3 * hp), const2),               # whh2
            pl.BlockSpec((1, 3 * hp), const2),                # bih2
            pl.BlockSpec((1, 3 * hp), const2),                # bhh2
            pl.BlockSpec((hp, op), const2),                   # fc weight
            pl.BlockSpec((1, op), const2),                    # fc bias
        ],
        out_specs=pl.BlockSpec((bp, op), const2),
        scratch_shapes=[
            pltpu.VMEM((bp, hp), jnp.float32),   # h of layer 1
            pltpu.VMEM((bp, hp), jnp.float32),   # h of layer 2
        ],
    )

    weight_bytes = 4 * sum(
        int(prep[k].size) for k in
        ("wih1", "whh1", "bih1", "bhh1", "wih2", "whh2", "bih2", "bhh2",
         "wfc", "bfc"))
    flops_per_step = (2 * bp * (dp + hp) * 3 * hp   # layer 1
                      + 2 * bp * (hp + hp) * 3 * hp)  # layer 2
    cost = pl.CostEstimate(
        flops=int(T * flops_per_step + 2 * bp * hp * op),
        transcendentals=int(T * 2 * 3 * bp * hp),
        bytes_accessed=int(4 * (x_p.size + bp * op) + weight_bytes),
    )

    out_p = pl.pallas_call(
        kernel,
        out_shape=jax.ShapeDtypeStruct((bp, op), jnp.float32),
        grid_spec=grid_spec,
        compiler_params=pltpu.CompilerParams(
            dimension_semantics=("arbitrary",)),   # recurrent time axis
        cost_estimate=cost,
    )(x_p,
      prep["wih1"], prep["whh1"], prep["bih1"], prep["bhh1"],
      prep["wih2"], prep["whh2"], prep["bih2"], prep["bhh2"],
      prep["wfc"], prep["bfc"])

    return out_p[:B, :output_dim]


# --------------------------------------------------------------------------
# PyTorch-style init + pure-JAX reference for verification
# --------------------------------------------------------------------------
def init_gru_net_params(key, input_dim, hidden_dim, output_dim):
    keys = jax.random.split(key, 10)
    bound = 1.0 / jnp.sqrt(jnp.float32(hidden_dim))

    def u(k, shape):
        return jax.random.uniform(k, shape, minval=-bound, maxval=bound,
                                  dtype=jnp.float32)

    return {
        "w_ih_l0": u(keys[0], (3 * hidden_dim, input_dim)),
        "w_hh_l0": u(keys[1], (3 * hidden_dim, hidden_dim)),
        "b_ih_l0": u(keys[2], (3 * hidden_dim,)),
        "b_hh_l0": u(keys[3], (3 * hidden_dim,)),
        "w_ih_l1": u(keys[4], (3 * hidden_dim, hidden_dim)),
        "w_hh_l1": u(keys[5], (3 * hidden_dim, hidden_dim)),
        "b_ih_l1": u(keys[6], (3 * hidden_dim,)),
        "b_hh_l1": u(keys[7], (3 * hidden_dim,)),
        "fc_w": u(keys[8], (output_dim, hidden_dim)),
        "fc_b": u(keys[9], (output_dim,)),
    }


def _reference_gru_net(x, params, hidden_dim, output_dim):
    """Pure-JAX mirror of GRUNet.forward(x, h=None) (inference, no dropout)."""
    B, T, _ = x.shape
    H = hidden_dim
    h1 = jnp.zeros((B, H), jnp.float32)
    h2 = jnp.zeros((B, H), jnp.float32)

    def cell(x_t, h, w_ih, w_hh, b_ih, b_hh):
        gi = x_t @ w_ih.T + b_ih
        gh = h @ w_hh.T + b_hh
        r = jax.nn.sigmoid(gi[:, :H] + gh[:, :H])
        z = jax.nn.sigmoid(gi[:, H:2 * H] + gh[:, H:2 * H])
        n = jnp.tanh(gi[:, 2 * H:] + r * gh[:, 2 * H:])
        return (1.0 - z) * n + z * h

    outs = []
    for t in range(T):
        h1 = cell(x[:, t, :], h1, params["w_ih_l0"], params["w_hh_l0"],
                  params["b_ih_l0"], params["b_hh_l0"])
        h2 = cell(h1, h2, params["w_ih_l1"], params["w_hh_l1"],
                  params["b_ih_l1"], params["b_hh_l1"])
        outs.append(h2)
    out = jnp.stack(outs, axis=1)                              # [B, T, H]
    out = jnp.maximum(out, 0.0).reshape(B * T, H) @ params["fc_w"].T + params["fc_b"]
    out = out.reshape(B, T, output_dim)
    return out[:, -1]


if __name__ == "__main__":
    batch, seq_len = 2, 8
    input_dim, hidden_dim, output_dim = 16, 32, 4

    root = jax.random.PRNGKey(0)
    k_params, k_x = jax.random.split(root, 2)

    params = init_gru_net_params(k_params, input_dim, hidden_dim, output_dim)
    x = jax.random.normal(k_x, (batch, seq_len, input_dim), dtype=jnp.float32)

    prep = prepare_gru_params(params, input_dim, hidden_dim, output_dim)

    out = gru_net_forward(x, prep)
    jax.block_until_ready(out)

    out_ref = _reference_gru_net(x, params, hidden_dim, output_dim)
    assert out.shape == (batch, output_dim)
    assert jnp.allclose(out, out_ref, atol=1e-4, rtol=1e-4), (
        jnp.max(jnp.abs(out - out_ref)))

    print("KERNEL_OK")
</pallas_src>

<mosaic_0001>
module attributes {stable_mosaic.version = 11 : i64} {
  func.func @_gru_net_kernel(%arg0: i32, %arg1: memref<1x8x128xf32, #tpu.memory_space<vmem>>, %arg2: memref<128x384xf32, #tpu.memory_space<vmem>>, %arg3: memref<128x384xf32, #tpu.memory_space<vmem>>, %arg4: memref<1x384xf32, #tpu.memory_space<vmem>>, %arg5: memref<1x384xf32, #tpu.memory_space<vmem>>, %arg6: memref<128x384xf32, #tpu.memory_space<vmem>>, %arg7: memref<128x384xf32, #tpu.memory_space<vmem>>, %arg8: memref<1x384xf32, #tpu.memory_space<vmem>>, %arg9: memref<1x384xf32, #tpu.memory_space<vmem>>, %arg10: memref<128x128xf32, #tpu.memory_space<vmem>>, %arg11: memref<1x128xf32, #tpu.memory_space<vmem>>, %arg12: memref<8x128xf32, #tpu.memory_space<vmem>>, %arg13: memref<8x128xf32, #tpu.memory_space<vmem>>, %arg14: memref<8x128xf32, #tpu.memory_space<vmem>>) attributes {dimension_semantics = [#tpu.dimension_semantics<arbitrary>], iteration_bounds = array<i64: 8>, scalar_prefetch = 0 : i64, scratch_operands = 2 : i64, tpu.core_type = #tpu.core_type<tc>, window_params = [{transform_indices = @transform_0, window_bounds = array<i64: 1, 8, 128>}, {pipeline_mode = #tpu.pipeline_mode<synchronous>, transform_indices = @transform_1, window_bounds = array<i64: 128, 384>}, {pipeline_mode = #tpu.pipeline_mode<synchronous>, transform_indices = @transform_2, window_bounds = array<i64: 128, 384>}, {pipeline_mode = #tpu.pipeline_mode<synchronous>, transform_indices = @transform_3, window_bounds = array<i64: 1, 384>}, {pipeline_mode = #tpu.pipeline_mode<synchronous>, transform_indices = @transform_4, window_bounds = array<i64: 1, 384>}, {pipeline_mode = #tpu.pipeline_mode<synchronous>, transform_indices = @transform_5, window_bounds = array<i64: 128, 384>}, {pipeline_mode = #tpu.pipeline_mode<synchronous>, transform_indices = @transform_6, window_bounds = array<i64: 128, 384>}, {pipeline_mode = #tpu.pipeline_mode<synchronous>, transform_indices = @transform_7, window_bounds = array<i64: 1, 384>}, {pipeline_mode = #tpu.pipeline_mode<synchronous>, transform_indices = @transform_8, window_bounds = array<i64: 1, 384>}, {pipeline_mode = #tpu.pipeline_mode<synchronous>, transform_indices = @transform_9, window_bounds = array<i64: 128, 128>}, {pipeline_mode = #tpu.pipeline_mode<synchronous>, transform_indices = @transform_10, window_bounds = array<i64: 1, 128>}, {pipeline_mode = #tpu.pipeline_mode<synchronous>, transform_indices = @transform_11, window_bounds = array<i64: 8, 128>}]} {
    %c0_i32 = arith.constant 0 : i32
    %0 = arith.cmpi eq, %arg0, %c0_i32 : i32
    %1 = arith.extui %0 : i1 to i32
    %c0_i32_0 = arith.constant 0 : i32
    %2 = arith.cmpi ne, %1, %c0_i32_0 : i32
    scf.if %2 {
      %cst_37 = arith.constant 0.000000e+00 : f32
      %84 = vector.broadcast %cst_37 : f32 to vector<8x128xf32>
      %c0_38 = arith.constant 0 : index
      %c0_39 = arith.constant 0 : index
      %85 = vector.load %arg13[%c0_38, %c0_39] : memref<8x128xf32, #tpu.memory_space<vmem>>, vector<8x128xf32>
      tpu.vector_store %arg13[%c0_38, %c0_39], %84 {strides = array<i32>} : memref<8x128xf32, #tpu.memory_space<vmem>>, vector<8x128xf32>,
      %cst_40 = arith.constant 0.000000e+00 : f32
      %86 = vector.broadcast %cst_40 : f32 to vector<8x128xf32>
      %c0_41 = arith.constant 0 : index
      %c0_42 = arith.constant 0 : index
      %87 = vector.load %arg14[%c0_41, %c0_42] : memref<8x128xf32, #tpu.memory_space<vmem>>, vector<8x128xf32>
      tpu.vector_store %arg14[%c0_41, %c0_42], %86 {strides = array<i32>} : memref<8x128xf32, #tpu.memory_space<vmem>>, vector<8x128xf32>,
    } else {
    }
    %c0 = arith.constant 0 : index
    %c0_1 = arith.constant 0 : index
    %c0_2 = arith.constant 0 : index
    %3 = vector.load %arg1[%c0, %c0_1, %c0_2] : memref<1x8x128xf32, #tpu.memory_space<vmem>>, vector<1x8x128xf32>
    %4 = vector.shape_cast %3 : vector<1x8x128xf32> to vector<8x128xf32>
    %c0_3 = arith.constant 0 : index
    %c0_4 = arith.constant 0 : index
    %5 = vector.load %arg13[%c0_3, %c0_4] : memref<8x128xf32, #tpu.memory_space<vmem>>, vector<8x128xf32>
    %c0_5 = arith.constant 0 : index
    %c0_6 = arith.constant 0 : index
    %6 = vector.load %arg2[%c0_5, %c0_6] : memref<128x384xf32, #tpu.memory_space<vmem>>, vector<128x384xf32>
    %c0_7 = arith.constant 0 : index
    %c0_8 = arith.constant 0 : index
    %7 = vector.load %arg3[%c0_7, %c0_8] : memref<128x384xf32, #tpu.memory_space<vmem>>, vector<128x384xf32>
    %c0_9 = arith.constant 0 : index
    %c0_10 = arith.constant 0 : index
    %8 = vector.load %arg4[%c0_9, %c0_10] : memref<1x384xf32, #tpu.memory_space<vmem>>, vector<1x384xf32>
    %c0_11 = arith.constant 0 : index
    %c0_12 = arith.constant 0 : index
    %9 = vector.load %arg5[%c0_11, %c0_12] : memref<1x384xf32, #tpu.memory_space<vmem>>, vector<1x384xf32>
    %cst = arith.constant dense<0.000000e+00> : vector<8x384xf32>
    %10 = tpu.matmul %4, %6, %cst {dimension_numbers = #tpu.dot_dimension_numbers<[1], [0], [0], [1], [0, 0, 1, 1], [], []>} : vector<8x128xf32>, vector<128x384xf32>, vector<8x384xf32> -> vector<8x384xf32>
    %11 = vector.broadcast %8 : vector<1x384xf32> to vector<8x384xf32>
    %12 = arith.addf %10, %11 : vector<8x384xf32>
    %cst_13 = arith.constant dense<0.000000e+00> : vector<8x384xf32>
    %13 = tpu.matmul %5, %7, %cst_13 {dimension_numbers = #tpu.dot_dimension_numbers<[1], [0], [0], [1], [0, 0, 1, 1], [], []>} : vector<8x128xf32>, vector<128x384xf32>, vector<8x384xf32> -> vector<8x384xf32>
    %14 = vector.broadcast %9 : vector<1x384xf32> to vector<8x384xf32>
    %15 = arith.addf %13, %14 : vector<8x384xf32>
    %16 = vector.extract_strided_slice %12 {offsets = [0, 0], sizes = [8, 128], strides = [1, 1]} : vector<8x384xf32> to vector<8x128xf32>
    %17 = vector.extract_strided_slice %15 {offsets = [0, 0], sizes = [8, 128], strides = [1, 1]} : vector<8x384xf32> to vector<8x128xf32>
    %18 = arith.addf %16, %17 : vector<8x128xf32>
    %19 = arith.negf %18 : vector<8x128xf32>
    %20 = math.exp %19 : vector<8x128xf32>
    %cst_14 = arith.constant 1.000000e+00 : f32
    %21 = vector.broadcast %cst_14 : f32 to vector<8x128xf32>
    %22 = arith.addf %21, %20 : vector<8x128xf32>
    %23 = arith.divf %21, %22 : vector<8x128xf32>
    %24 = vector.extract_strided_slice %12 {offsets = [0, 128], sizes = [8, 128], strides = [1, 1]} : vector<8x384xf32> to vector<8x128xf32>
    %25 = vector.extract_strided_slice %15 {offsets = [0, 128], sizes = [8, 128], strides = [1, 1]} : vector<8x384xf32> to vector<8x128xf32>
    %26 = arith.addf %24, %25 : vector<8x128xf32>
    %27 = arith.negf %26 : vector<8x128xf32>
    %28 = math.exp %27 : vector<8x128xf32>
    %cst_15 = arith.constant 1.000000e+00 : f32
    %29 = vector.broadcast %cst_15 : f32 to vector<8x128xf32>
    %30 = arith.addf %29, %28 : vector<8x128xf32>
    %31 = arith.divf %29, %30 : vector<8x128xf32>
    %32 = vector.extract_strided_slice %12 {offsets = [0, 256], sizes = [8, 128], strides = [1, 1]} : vector<8x384xf32> to vector<8x128xf32>
    %33 = vector.extract_strided_slice %15 {offsets = [0, 256], sizes = [8, 128], strides = [1, 1]} : vector<8x384xf32> to vector<8x128xf32>
    %34 = arith.mulf %23, %33 : vector<8x128xf32>
    %35 = arith.addf %32, %34 : vector<8x128xf32>
    %36 = math.tanh %35 : vector<8x128xf32>
    %cst_16 = arith.constant 1.000000e+00 : f32
    %37 = vector.broadcast %cst_16 : f32 to vector<8x128xf32>
    %38 = arith.subf %37, %31 : vector<8x128xf32>
    %39 = arith.mulf %38, %36 : vector<8x128xf32>
    %40 = arith.mulf %31, %5 : vector<8x128xf32>
    %41 = arith.addf %39, %40 : vector<8x128xf32>
    %c0_17 = arith.constant 0 : index
    %c0_18 = arith.constant 0 : index
    %42 = vector.load %arg13[%c0_17, %c0_18] : memref<8x128xf32, #tpu.memory_space<vmem>>, vector<8x128xf32>
    tpu.vector_store %arg13[%c0_17, %c0_18], %41 {strides = array<i32>} : memref<8x128xf32, #tpu.memory_space<vmem>>, vector<8x128xf32>,
    %c0_19 = arith.constant 0 : index
    %c0_20 = arith.constant 0 : index
    %43 = vector.load %arg14[%c0_19, %c0_20] : memref<8x128xf32, #tpu.memory_space<vmem>>, vector<8x128xf32>
    %c0_21 = arith.constant 0 : index
    %c0_22 = arith.constant 0 : index
    %44 = vector.load %arg6[%c0_21, %c0_22] : memref<128x384xf32, #tpu.memory_space<vmem>>, vector<128x384xf32>
    %c0_23 = arith.constant 0 : index
    %c0_24 = arith.constant 0 : index
    %45 = vector.load %arg7[%c0_23, %c0_24] : memref<128x384xf32, #tpu.memory_space<vmem>>, vector<128x384xf32>
    %c0_25 = arith.constant 0 : index
    %c0_26 = arith.constant 0 : index
    %46 = vector.load %arg8[%c0_25, %c0_26] : memref<1x384xf32, #tpu.memory_space<vmem>>, vector<1x384xf32>
    %c0_27 = arith.constant 0 : index
    %c0_28 = arith.constant 0 : index
    %47 = vector.load %arg9[%c0_27, %c0_28] : memref<1x384xf32, #tpu.memory_space<vmem>>, vector<1x384xf32>
    %cst_29 = arith.constant dense<0.000000e+00> : vector<8x384xf32>
    %48 = tpu.matmul %41, %44, %cst_29 {dimension_numbers = #tpu.dot_dimension_numbers<[1], [0], [0], [1], [0, 0, 1, 1], [], []>} : vector<8x128xf32>, vector<128x384xf32>, vector<8x384xf32> -> vector<8x384xf32>
    %49 = vector.broadcast %46 : vector<1x384xf32> to vector<8x384xf32>
    %50 = arith.addf %48, %49 : vector<8x384xf32>
    %cst_30 = arith.constant dense<0.000000e+00> : vector<8x384xf32>
    %51 = tpu.matmul %43, %45, %cst_30 {dimension_numbers = #tpu.dot_dimension_numbers<[1], [0], [0], [1], [0, 0, 1, 1], [], []>} : vector<8x128xf32>, vector<128x384xf32>, vector<8x384xf32> -> vector<8x384xf32>
    %52 = vector.broadcast %47 : vector<1x384xf32> to vector<8x384xf32>
    %53 = arith.addf %51, %52 : vector<8x384xf32>
    %54 = vector.extract_strided_slice %50 {offsets = [0, 0], sizes = [8, 128], strides = [1, 1]} : vector<8x384xf32> to vector<8x128xf32>
    %55 = vector.extract_strided_slice %53 {offsets = [0, 0], sizes = [8, 128], strides = [1, 1]} : vector<8x384xf32> to vector<8x128xf32>
    %56 = arith.addf %54, %55 : vector<8x128xf32>
    %57 = arith.negf %56 : vector<8x128xf32>
    %58 = math.exp %57 : vector<8x128xf32>
    %cst_31 = arith.constant 1.000000e+00 : f32
    %59 = vector.broadcast %cst_31 : f32 to vector<8x128xf32>
    %60 = arith.addf %59, %58 : vector<8x128xf32>
    %61 = arith.divf %59, %60 : vector<8x128xf32>
    %62 = vector.extract_strided_slice %50 {offsets = [0, 128], sizes = [8, 128], strides = [1, 1]} : vector<8x384xf32> to vector<8x128xf32>
    %63 = vector.extract_strided_slice %53 {offsets = [0, 128], sizes = [8, 128], strides = [1, 1]} : vector<8x384xf32> to vector<8x128xf32>
    %64 = arith.addf %62, %63 : vector<8x128xf32>
    %65 = arith.negf %64 : vector<8x128xf32>
    %66 = math.exp %65 : vector<8x128xf32>
    %cst_32 = arith.constant 1.000000e+00 : f32
    %67 = vector.broadcast %cst_32 : f32 to vector<8x128xf32>
    %68 = arith.addf %67, %66 : vector<8x128xf32>
    %69 = arith.divf %67, %68 : vector<8x128xf32>
    %70 = vector.extract_strided_slice %50 {offsets = [0, 256], sizes = [8, 128], strides = [1, 1]} : vector<8x384xf32> to vector<8x128xf32>
    %71 = vector.extract_strided_slice %53 {offsets = [0, 256], sizes = [8, 128], strides = [1, 1]} : vector<8x384xf32> to vector<8x128xf32>
    %72 = arith.mulf %61, %71 : vector<8x128xf32>
    %73 = arith.addf %70, %72 : vector<8x128xf32>
    %74 = math.tanh %73 : vector<8x128xf32>
    %cst_33 = arith.constant 1.000000e+00 : f32
    %75 = vector.broadcast %cst_33 : f32 to vector<8x128xf32>
    %76 = arith.subf %75, %69 : vector<8x128xf32>
    %77 = arith.mulf %76, %74 : vector<8x128xf32>
    %78 = arith.mulf %69, %43 : vector<8x128xf32>
    %79 = arith.addf %77, %78 : vector<8x128xf32>
    %c0_34 = arith.constant 0 : index
    %c0_35 = arith.constant 0 : index
    %80 = vector.load %arg14[%c0_34, %c0_35] : memref<8x128xf32, #tpu.memory_space<vmem>>, vector<8x128xf32>
    tpu.vector_store %arg14[%c0_34, %c0_35], %79 {strides = array<i32>} : memref<8x128xf32, #tpu.memory_space<vmem>>, vector<8x128xf32>,
    %c7_i32 = arith.constant 7 : i32
    %81 = arith.cmpi eq, %arg0, %c7_i32 : i32
    %82 = arith.extui %81 : i1 to i32
    %c0_i32_36 = arith.constant 0 : i32
    %83 = arith.cmpi ne, %82, %c0_i32_36 : i32
    scf.if %83 {
      %cst_37 = arith.constant 0.000000e+00 : f32
      %84 = vector.broadcast %cst_37 : f32 to vector<8x128xf32>
      %85 = arith.maximumf %79, %84 : vector<8x128xf32>
      %c0_38 = arith.constant 0 : index
      %c0_39 = arith.constant 0 : index
      %86 = vector.load %arg10[%c0_38, %c0_39] : memref<128x128xf32, #tpu.memory_space<vmem>>, vector<128x128xf32>
      %cst_40 = arith.constant dense<0.000000e+00> : vector<8x128xf32>
      %87 = tpu.matmul %85, %86, %cst_40 {dimension_numbers = #tpu.dot_dimension_numbers<[1], [0], [0], [1], [0, 0, 1, 1], [], []>} : vector<8x128xf32>, vector<128x128xf32>, vector<8x128xf32> -> vector<8x128xf32>
      %c0_41 = arith.constant 0 : index
      %c0_42 = arith.constant 0 : index
      %88 = vector.load %arg11[%c0_41, %c0_42] : memref<1x128xf32, #tpu.memory_space<vmem>>, vector<1x128xf32>
      %89 = vector.broadcast %88 : vector<1x128xf32> to vector<8x128xf32>
      %90 = arith.addf %87, %89 : vector<8x128xf32>
      %c0_43 = arith.constant 0 : index
      %c0_44 = arith.constant 0 : index
      %91 = vector.load %arg12[%c0_43, %c0_44] : memref<8x128xf32, #tpu.memory_space<vmem>>, vector<8x128xf32>
      tpu.vector_store %arg12[%c0_43, %c0_44], %90 {strides = array<i32>} : memref<8x128xf32, #tpu.memory_space<vmem>>, vector<8x128xf32>,
    } else {
    }
    return
  }
  func.func @transform_0(%arg0: i32) -> (i32, i32, i32) {
    %c0_i32 = arith.constant 0 : i32
    %c0_i32_0 = arith.constant 0 : i32
    %c0_i32_1 = arith.constant 0 : i32
    return %arg0, %c0_i32, %c0_i32_0 : i32, i32, i32
  }
  func.func @transform_1(%arg0: i32) -> (i32, i32) {
    %c0_i32 = arith.constant 0 : i32
    %c0_i32_0 = arith.constant 0 : i32
    %c0_i32_1 = arith.constant 0 : i32
    return %c0_i32, %c0_i32_0 : i32, i32
  }
  func.func @transform_2(%arg0: i32) -> (i32, i32) {
    %c0_i32 = arith.constant 0 : i32
    %c0_i32_0 = arith.constant 0 : i32
    %c0_i32_1 = arith.constant 0 : i32
    return %c0_i32, %c0_i32_0 : i32, i32
  }
  func.func @transform_3(%arg0: i32) -> (i32, i32) {
    %c0_i32 = arith.constant 0 : i32
    %c0_i32_0 = arith.constant 0 : i32
    %c0_i32_1 = arith.constant 0 : i32
    return %c0_i32, %c0_i32_0 : i32, i32
  }
  func.func @transform_4(%arg0: i32) -> (i32, i32) {
    %c0_i32 = arith.constant 0 : i32
    %c0_i32_0 = arith.constant 0 : i32
    %c0_i32_1 = arith.constant 0 : i32
    return %c0_i32, %c0_i32_0 : i32, i32
  }
  func.func @transform_5(%arg0: i32) -> (i32, i32) {
    %c0_i32 = arith.constant 0 : i32
    %c0_i32_0 = arith.constant 0 : i32
    %c0_i32_1 = arith.constant 0 : i32
    return %c0_i32, %c0_i32_0 : i32, i32
  }
  func.func @transform_6(%arg0: i32) -> (i32, i32) {
    %c0_i32 = arith.constant 0 : i32
    %c0_i32_0 = arith.constant 0 : i32
    %c0_i32_1 = arith.constant 0 : i32
    return %c0_i32, %c0_i32_0 : i32, i32
  }
  func.func @transform_7(%arg0: i32) -> (i32, i32) {
    %c0_i32 = arith.constant 0 : i32
    %c0_i32_0 = arith.constant 0 : i32
    %c0_i32_1 = arith.constant 0 : i32
    return %c0_i32, %c0_i32_0 : i32, i32
  }
  func.func @transform_8(%arg0: i32) -> (i32, i32) {
    %c0_i32 = arith.constant 0 : i32
    %c0_i32_0 = arith.constant 0 : i32
    %c0_i32_1 = arith.constant 0 : i32
    return %c0_i32, %c0_i32_0 : i32, i32
  }
  func.func @transform_9(%arg0: i32) -> (i32, i32) {
    %c0_i32 = arith.constant 0 : i32
    %c0_i32_0 = arith.constant 0 : i32
    %c0_i32_1 = arith.constant 0 : i32
    return %c0_i32, %c0_i32_0 : i32, i32
  }
  func.func @transform_10(%arg0: i32) -> (i32, i32) {
    %c0_i32 = arith.constant 0 : i32
    %c0_i32_0 = arith.constant 0 : i32
    %c0_i32_1 = arith.constant 0 : i32
    return %c0_i32, %c0_i32_0 : i32, i32
  }
  func.func @transform_11(%arg0: i32) -> (i32, i32) {
    %c0_i32 = arith.constant 0 : i32
    %c0_i32_0 = arith.constant 0 : i32
    %c0_i32_1 = arith.constant 0 : i32
    return %c0_i32, %c0_i32_0 : i32, i32
  }
}

</mosaic_0001>

<llo_original>
// kernel: tpu_custom_call.1
$region0: #{tpu_custom_call.1}
  #allocation0 [shape = 'u32[]', space=smem, size = 0x4, offset = 0x4, fixed_abs, tag = 'smem constant byte address 0x4 - core index']
  #allocation1 [shape = 'u32[144,128]{1,0:T(1,128)}', space=vmem, size = 0x12000, scoped, tag = 'internal scratch']
  #allocation2 [shape = 'f32[8,128]{1,0:T(8,128)}', space=vmem, size = 0x1000, scoped, tag = 'scratch operand']
  #allocation3 [shape = 'f32[8,128]{1,0:T(8,128)}', space=vmem, size = 0x1000, scoped, tag = 'scratch operand']
  %s0 = inlined_call_operand.hbm [shape: f32[8,8,128], index: 0, kind: input, shape index: {}]
  %s1 = inlined_call_operand.hbm [shape: f32[128,384], index: 1, kind: input, shape index: {}]
  %s2 = inlined_call_operand.hbm [shape: f32[128,384], index: 2, kind: input, shape index: {}]
  %s3 = inlined_call_operand.vmem [shape: f32[1,384], index: 3, kind: input, shape index: {}]
  %s4 = inlined_call_operand.vmem [shape: f32[1,384], index: 4, kind: input, shape index: {}]
  %s5 = inlined_call_operand.hbm [shape: f32[128,384], index: 5, kind: input, shape index: {}]
  %s6 = inlined_call_operand.hbm [shape: f32[128,384], index: 6, kind: input, shape index: {}]
  %s7 = inlined_call_operand.vmem [shape: f32[1,384], index: 7, kind: input, shape index: {}]
  %s8 = inlined_call_operand.vmem [shape: f32[1,384], index: 8, kind: input, shape index: {}]
  %s9 = inlined_call_operand.hbm [shape: f32[128,128], index: 9, kind: input, shape index: {}]
  %s10 = inlined_call_operand.vmem [shape: f32[1,128], index: 10, kind: input, shape index: {}]
  %s11 = inlined_call_operand.hbm [shape: f32[8,128], index: 11, kind: output, shape index: {}]
  %s12 = sld [smem:[#allocation0]]
  $region109: #{tpu_custom_call.1} parent=0
    _
  %s14 = ssub.s32 1, %s12
  %s15 = scalar_select 0, %s14, %s12
  $region1: #{tpu_custom_call.1} parent=0
    #allocation4 [shape = 'u8[8192]{0}', space=vmem, size = 0x2000, scoped, tag = 'input window, operand 0']
    #allocation5 [shape = 's32[2]{0}', space=sflag, size = 0x8, scoped, tag = 'scoped memory for tpu_custom_call.1']
    #allocation6 [shape = 's32[2]{0}', space=sflag, size = 0x8, scoped, tag = 'scoped memory for tpu_custom_call.1']
    #allocation7 [shape = 'u8[196608]{0}', space=vmem, size = 0x30000, scoped, tag = 'input window, operand 1, single buffered']
    #allocation8 [shape = 's32[1]{0}', space=sflag, size = 0x4, scoped, tag = 'scoped memory for tpu_custom_call.1']
    #allocation9 [shape = 'u8[196608]{0}', space=vmem, size = 0x30000, scoped, tag = 'input window, operand 2, single buffered']
    #allocation10 [shape = 'u8[196608]{0}', space=vmem, size = 0x30000, scoped, tag = 'input window, operand 5, single buffered']
    #allocation11 [shape = 's32[1]{0}', space=sflag, size = 0x4, scoped, tag = 'scoped memory for tpu_custom_call.1']
    #allocation12 [shape = 'u8[196608]{0}', space=vmem, size = 0x30000, scoped, tag = 'input window, operand 6, single buffered']
    #allocation13 [shape = 'u8[65536]{0}', space=vmem, size = 0x10000, scoped, tag = 'input window, operand 9, single buffered']
    #allocation14 [shape = 's32[1]{0}', space=sflag, size = 0x4, scoped, tag = 'scoped memory for tpu_custom_call.1']
    #allocation15 [shape = 'u8[4096]{0}', space=vmem, size = 0x1000, scoped, tag = 'output window, operand 0, single buffered']
    %16 = vsyncpa [#allocation5], 0
    %s17 = scalar_lea.sflag [#allocation5], 1
    %18 = vsyncpa %s17, 0
    %19 = vsyncpa [#allocation8], 0
    %20 = vsyncpa [#allocation11], 0
    %21 = vsyncpa [#allocation14], 0
    %22 = vsyncpa [#allocation6], 0
    loop: start=0, step=1, limit=10
    $region2: #{tpu_custom_call.1} parent=1 // loop_pre_header
      _
    $region3: #{tpu_custom_call.1} parent=1 // loop_header
      %s24 = sphi 0, %s28
      %p25 = scmp.ge.s32.totalorder %s24, 10
      %s34 = sphi 0, %s36
      %s37 = sphi 0, %s34
      %s38 = sphi 0, %s37
      %s54 = sphi 0, %s38
      %s58 = sphi 0, %s58
      %s60 = sphi 0, %s58
      %s61 = sphi 0, %s60
      %s75 = sphi 0, %s61
      %s79 = sphi 0, %s79
      %s81 = sphi 0, %s79
      %s82 = sphi 0, %s81
      %s96 = sphi 0, %s82
      %s100 = sphi 0, %s100
      %s102 = sphi 0, %s100
      %s103 = sphi 0, %s102
      %s117 = sphi 0, %s103
      %s121 = sphi 0, %s121
      %s123 = sphi 0, %s121
      %s124 = sphi 0, %s123
      %s138 = sphi 0, %s124
      %s142 = sphi 0, %s142
      %s144 = sphi 0, %s142
      %s145 = sphi 0, %s144
      %s159 = sphi 0, %s145
      %s163 = sphi 0, %s163
      %s165 = sphi 0, %s163
      %s166 = sphi 0, %s165
      %s180 = sphi 0, %s166
      %s184 = sphi 0, %s184
      %s186 = sphi 0, %s184
      %s187 = sphi 0, %s186
      %s201 = sphi 0, %s187
      %s205 = sphi 0, %s205
      %s207 = sphi 0, %s205
      %s208 = sphi 0, %s207
      %s222 = sphi 0, %s208
      %s226 = sphi 0, %s226
      %s228 = sphi 0, %s226
      %s229 = sphi 0, %s228
      %s243 = sphi 0, %s229
      %s247 = sphi 0, %s247
      %s249 = sphi 0, %s247
      %s250 = sphi 0, %s249
      %s264 = sphi 0, %s250
      %s268 = sphi 0, %s268
      %s270 = sphi 0, %s268
      %s271 = sphi 0, %s270
      %s285 = sphi 0, %s271
    $region4: #{tpu_custom_call.1} parent=1 // loop_header_branch
      %27 = sbr.rel (%p25) target = $region8
    $region5: #{tpu_custom_call.1} parent=1 // loop_body
      %s29 = ssub.s32 %s24, 1
      %s30 = ssub.s32 %s24, 2
      %s31 = sadd.s32 %s24, 1
      %s32 = ssub.s32 %s24, %s31
      %p33 = scmp.eq.s32.totalorder %s32, 0
      %s35 = sadd.s32 %s34, 1
      %s36 = scalar_select %p33, %s34, %s35
      %p39 = pneg %p33
      %p40 = scmp.eq.s32.totalorder %s24, 7
      %p41 = por %p39, %p40
      %p42 = scmp.ne.s32.totalorder %s34, %s37
      %p43 = scmp.eq.s32.totalorder %s24, 0
      %p44 = por %p42, %p43
      %p45 = scmp.ne.s32.totalorder %s34, %s37
      %p46 = scmp.eq.s32.totalorder %s29, 7
      %p47 = por %p45, %p46
      %p48 = scmp.ne.s32.totalorder %s37, %s38
      %p49 = scmp.eq.s32.totalorder %s29, 0
      %p50 = por %p48, %p49
      %p51 = scmp.ne.s32.totalorder %s37, %s38
      %p52 = scmp.eq.s32.totalorder %s30, 7
      %p53 = por %p51, %p52
      %p55 = scmp.ne.s32.totalorder %s38, %s54
      %p56 = scmp.eq.s32.totalorder %s30, 0
      %p57 = por %p55, %p56
      %s59 = sadd.s32 %s58, 1
      %p62 = scmp.eq.s32.totalorder %s24, 7
      %p63 = scmp.ne.s32.totalorder %s58, %s60
      %p64 = scmp.eq.s32.totalorder %s24, 0
      %p65 = por %p63, %p64
      %p66 = scmp.ne.s32.totalorder %s58, %s60
      %p67 = scmp.eq.s32.totalorder %s29, 7
      %p68 = por %p66, %p67
      %p69 = scmp.ne.s32.totalorder %s60, %s61
      %p70 = scmp.eq.s32.totalorder %s29, 0
      %p71 = por %p69, %p70
      %p72 = scmp.ne.s32.totalorder %s60, %s61
      %p73 = scmp.eq.s32.totalorder %s30, 7
      %p74 = por %p72, %p73
      %p76 = scmp.ne.s32.totalorder %s61, %s75
      %p77 = scmp.eq.s32.totalorder %s30, 0
      %p78 = por %p76, %p77
      %s80 = sadd.s32 %s79, 1
      %p83 = scmp.eq.s32.totalorder %s24, 7
      %p84 = scmp.ne.s32.totalorder %s79, %s81
      %p85 = scmp.eq.s32.totalorder %s24, 0
      %p86 = por %p84, %p85
      %p87 = scmp.ne.s32.totalorder %s79, %s81
      %p88 = scmp.eq.s32.totalorder %s29, 7
      %p89 = por %p87, %p88
      %p90 = scmp.ne.s32.totalorder %s81, %s82
      %p91 = scmp.eq.s32.totalorder %s29, 0
      %p92 = por %p90, %p91
      %p93 = scmp.ne.s32.totalorder %s81, %s82
      %p94 = scmp.eq.s32.totalorder %s30, 7
      %p95 = por %p93, %p94
      %p97 = scmp.ne.s32.totalorder %s82, %s96
      %p98 = scmp.eq.s32.totalorder %s30, 0
      %p99 = por %p97, %p98
      %s101 = sadd.s32 %s100, 1
      %p104 = scmp.eq.s32.totalorder %s24, 7
      %p105 = scmp.ne.s32.totalorder %s100, %s102
      %p106 = scmp.eq.s32.totalorder %s24, 0
      %p107 = por %p105, %p106
      %p108 = scmp.ne.s32.totalorder %s100, %s102
      %p109 = scmp.eq.s32.totalorder %s29, 7
      %p110 = por %p108, %p109
      %p111 = scmp.ne.s32.totalorder %s102, %s103
      %p112 = scmp.eq.s32.totalorder %s29, 0
      %p113 = por %p111, %p112
      %p114 = scmp.ne.s32.totalorder %s102, %s103
      %p115 = scmp.eq.s32.totalorder %s30, 7
      %p116 = por %p114, %p115
      %p118 = scmp.ne.s32.totalorder %s103, %s117
      %p119 = scmp.eq.s32.totalorder %s30, 0
      %p120 = por %p118, %p119
      %s122 = sadd.s32 %s121, 1
      %p125 = scmp.eq.s32.totalorder %s24, 7
      %p126 = scmp.ne.s32.totalorder %s121, %s123
      %p127 = scmp.eq.s32.totalorder %s24, 0
      %p128 = por %p126, %p127
      %p129 = scmp.ne.s32.totalorder %s121, %s123
      %p130 = scmp.eq.s32.totalorder %s29, 7
      %p131 = por %p129, %p130
      %p132 = scmp.ne.s32.totalorder %s123, %s124
      %p133 = scmp.eq.s32.totalorder %s29, 0
      %p134 = por %p132, %p133
      %p135 = scmp.ne.s32.totalorder %s123, %s124
      %p136 = scmp.eq.s32.totalorder %s30, 7
      %p137 = por %p135, %p136
      %p139 = scmp.ne.s32.totalorder %s124, %s138
      %p140 = scmp.eq.s32.totalorder %s30, 0
      %p141 = por %p139, %p140
      %s143 = sadd.s32 %s142, 1
      %p146 = scmp.eq.s32.totalorder %s24, 7
      %p147 = scmp.ne.s32.totalorder %s142, %s144
      %p148 = scmp.eq.s32.totalorder %s24, 0
      %p149 = por %p147, %p148
      %p150 = scmp.ne.s32.totalorder %s142, %s144
      %p151 = scmp.eq.s32.totalorder %s29, 7
      %p152 = por %p150, %p151
      %p153 = scmp.ne.s32.totalorder %s144, %s145
      %p154 = scmp.eq.s32.totalorder %s29, 0
      %p155 = por %p153, %p154
      %p156 = scmp.ne.s32.totalorder %s144, %s145
      %p157 = scmp.eq.s32.totalorder %s30, 7
      %p158 = por %p156, %p157
      %p160 = scmp.ne.s32.totalorder %s145, %s159
      %p161 = scmp.eq.s32.totalorder %s30, 0
      %p162 = por %p160, %p161
      %s164 = sadd.s32 %s163, 1
      %p167 = scmp.eq.s32.totalorder %s24, 7
      %p168 = scmp.ne.s32.totalorder %s163, %s165
      %p169 = scmp.eq.s32.totalorder %s24, 0
      %p170 = por %p168, %p169
      %p171 = scmp.ne.s32.totalorder %s163, %s165
      %p172 = scmp.eq.s32.totalorder %s29, 7
      %p173 = por %p171, %p172
      %p174 = scmp.ne.s32.totalorder %s165, %s166
      %p175 = scmp.eq.s32.totalorder %s29, 0
      %p176 = por %p174, %p175
      %p177 = scmp.ne.s32.totalorder %s165, %s166
      %p178 = scmp.eq.s32.totalorder %s30, 7
      %p179 = por %p177, %p178
      %p181 = scmp.ne.s32.totalorder %s166, %s180
      %p182 = scmp.eq.s32.totalorder %s30, 0
      %p183 = por %p181, %p182
      %s185 = sadd.s32 %s184, 1
      %p188 = scmp.eq.s32.totalorder %s24, 7
      %p189 = scmp.ne.s32.totalorder %s184, %s186
      %p190 = scmp.eq.s32.totalorder %s24, 0
      %p191 = por %p189, %p190
      %p192 = scmp.ne.s32.totalorder %s184, %s186
      %p193 = scmp.eq.s32.totalorder %s29, 7
      %p194 = por %p192, %p193
      %p195 = scmp.ne.s32.totalorder %s186, %s187
      %p196 = scmp.eq.s32.totalorder %s29, 0
      %p197 = por %p195, %p196
      %p198 = scmp.ne.s32.totalorder %s186, %s187
      %p199 = scmp.eq.s32.totalorder %s30, 7
      %p200 = por %p198, %p199
      %p202 = scmp.ne.s32.totalorder %s187, %s201
      %p203 = scmp.eq.s32.totalorder %s30, 0
      %p204 = por %p202, %p203
      %s206 = sadd.s32 %s205, 1
      %p209 = scmp.eq.s32.totalorder %s24, 7
      %p210 = scmp.ne.s32.totalorder %s205, %s207
      %p211 = scmp.eq.s32.totalorder %s24, 0
      %p212 = por %p210, %p211
      %p213 = scmp.ne.s32.totalorder %s205, %s207
      %p214 = scmp.eq.s32.totalorder %s29, 7
      %p215 = por %p213, %p214
      %p216 = scmp.ne.s32.totalorder %s207, %s208
      %p217 = scmp.eq.s32.totalorder %s29, 0
      %p218 = por %p216, %p217
      %p219 = scmp.ne.s32.totalorder %s207, %s208
      %p220 = scmp.eq.s32.totalorder %s30, 7
      %p221 = por %p219, %p220
      %p223 = scmp.ne.s32.totalorder %s208, %s222
      %p224 = scmp.eq.s32.totalorder %s30, 0
      %p225 = por %p223, %p224
      %s227 = sadd.s32 %s226, 1
      %p230 = scmp.eq.s32.totalorder %s24, 7
      %p231 = scmp.ne.s32.totalorder %s226, %s228
      %p232 = scmp.eq.s32.totalorder %s24, 0
      %p233 = por %p231, %p232
      %p234 = scmp.ne.s32.totalorder %s226, %s228
      %p235 = scmp.eq.s32.totalorder %s29, 7
      %p236 = por %p234, %p235
      %p237 = scmp.ne.s32.totalorder %s228, %s229
      %p238 = scmp.eq.s32.totalorder %s29, 0
      %p239 = por %p237, %p238
      %p240 = scmp.ne.s32.totalorder %s228, %s229
      %p241 = scmp.eq.s32.totalorder %s30, 7
      %p242 = por %p240, %p241
      %p244 = scmp.ne.s32.totalorder %s229, %s243
      %p245 = scmp.eq.s32.totalorder %s30, 0
      %p246 = por %p244, %p245
      %s248 = sadd.s32 %s247, 1
      %p251 = scmp.eq.s32.totalorder %s24, 7
      %p252 = scmp.ne.s32.totalorder %s247, %s249
      %p253 = scmp.eq.s32.totalorder %s24, 0
      %p254 = por %p252, %p253
      %p255 = scmp.ne.s32.totalorder %s247, %s249
      %p256 = scmp.eq.s32.totalorder %s29, 7
      %p257 = por %p255, %p256
      %p258 = scmp.ne.s32.totalorder %s249, %s250
      %p259 = scmp.eq.s32.totalorder %s29, 0
      %p260 = por %p258, %p259
      %p261 = scmp.ne.s32.totalorder %s249, %s250
      %p262 = scmp.eq.s32.totalorder %s30, 7
      %p263 = por %p261, %p262
      %p265 = scmp.ne.s32.totalorder %s250, %s264
      %p266 = scmp.eq.s32.totalorder %s30, 0
      %p267 = por %p265, %p266
      %s269 = sadd.s32 %s268, 1
      %p272 = scmp.eq.s32.totalorder %s24, 7
      %p273 = scmp.ne.s32.totalorder %s268, %s270
      %p274 = scmp.eq.s32.totalorder %s24, 0
      %p275 = por %p273, %p274
      %p276 = scmp.ne.s32.totalorder %s268, %s270
      %p277 = scmp.eq.s32.totalorder %s29, 7
      %p278 = por %p276, %p277
      %p279 = scmp.ne.s32.totalorder %s270, %s271
      %p280 = scmp.eq.s32.totalorder %s29, 0
      %p281 = por %p279, %p280
      %p282 = scmp.ne.s32.totalorder %s270, %s271
      %p283 = scmp.eq.s32.totalorder %s30, 7
      %p284 = por %p282, %p283
      %p286 = scmp.ne.s32.totalorder %s271, %s285
      %p287 = scmp.eq.s32.totalorder %s30, 0
      %p288 = por %p286, %p287
      %p289 = scmp.le.s32.totalorder 1, %s24
      %p290 = scmp.lt.s32.totalorder %s24, 9
      %p291 = pnand %p289, %p290
      %p292 = pneg %p291
      // Predicated region
      $region9: #{tpu_custom_call.1} parent=5 // pred_check
        _
      $region10: #{tpu_custom_call.1} parent=5 // pred_check_branch
        %294 = sbr.rel (%p291) target = $region12
      $region11: #{tpu_custom_call.1} parent=5 // pred_region
        %s295 = ssub.s32 %s24, 1
        // Predicated region
        $region13: #{tpu_custom_call.1} parent=11 // pred_check
          %p296 = pneg %p71
        $region14: #{tpu_custom_call.1} parent=11 // pred_check_branch
          %298 = sbr.rel (%p296) target = $region16
        $region15: #{tpu_custom_call.1} parent=11 // pred_region
          %s300 = ssub.s32 6144, 6144
          %301 = vsyncadd [#allocation8], %s300
          %s302 = sshll.u32 [#allocation7], 4
          %s303 = int_to_ptr.vmem [resolvable:$true] %s302
          %308 = dma.hbm_to_vmem [thread:$0]  %s1, 6144, %s303, [#allocation8], 384, 384, 24
        $region16: #{tpu_custom_call.1} parent=11 // pred_fallthru
          _
        // Predicated region
        $region17: #{tpu_custom_call.1} parent=11 // pred_check
          %p309 = pneg %p92
        $region18: #{tpu_custom_call.1} parent=11 // pred_check_branch
          %311 = sbr.rel (%p309) target = $region20
        $region19: #{tpu_custom_call.1} parent=11 // pred_region
          %s313 = ssub.s32 6144, 6144
          %314 = vsyncadd [#allocation8], %s313
          %s315 = sshll.u32 [#allocation9], 4
          %s316 = int_to_ptr.vmem [resolvable:$true] %s315
          %321 = dma.hbm_to_vmem [thread:$0]  %s2, 6144, %s316, [#allocation8], 384, 384, 24
        $region20: #{tpu_custom_call.1} parent=11 // pred_fallthru
          _
        // Predicated region
        $region21: #{tpu_custom_call.1} parent=11 // pred_check
          %p322 = pneg %p113
        $region22: #{tpu_custom_call.1} parent=11 // pred_check_branch
          %324 = sbr.rel (%p322) target = $region24
        $region23: #{tpu_custom_call.1} parent=11 // pred_region
          _
        $region24: #{tpu_custom_call.1} parent=11 // pred_fallthru
          _
        // Predicated region
        $region25: #{tpu_custom_call.1} parent=11 // pred_check
          %p325 = pneg %p134
        $region26: #{tpu_custom_call.1} parent=11 // pred_check_branch
          %327 = sbr.rel (%p325) target = $region28
        $region27: #{tpu_custom_call.1} parent=11 // pred_region
          _
        $region28: #{tpu_custom_call.1} parent=11 // pred_fallthru
          _
        // Predicated region
        $region29: #{tpu_custom_call.1} parent=11 // pred_check
          %p328 = pneg %p155
        $region30: #{tpu_custom_call.1} parent=11 // pred_check_branch
          %330 = sbr.rel (%p328) target = $region32
        $region31: #{tpu_custom_call.1} parent=11 // pred_region
          %s332 = ssub.s32 6144, 6144
          %333 = vsyncadd [#allocation11], %s332
          %s334 = sshll.u32 [#allocation10], 4
          %s335 = int_to_ptr.vmem [resolvable:$true] %s334
          %340 = dma.hbm_to_vmem [thread:$0]  %s5, 6144, %s335, [#allocation11], 384, 384, 24
        $region32: #{tpu_custom_call.1} parent=11 // pred_fallthru
          _
        // Predicated region
        $region33: #{tpu_custom_call.1} parent=11 // pred_check
          %p341 = pneg %p176
        $region34: #{tpu_custom_call.1} parent=11 // pred_check_branch
          %343 = sbr.rel (%p341) target = $region36
        $region35: #{tpu_custom_call.1} parent=11 // pred_region
          %s345 = ssub.s32 6144, 6144
          %346 = vsyncadd [#allocation11], %s345
          %s347 = sshll.u32 [#allocation12], 4
          %s348 = int_to_ptr.vmem [resolvable:$true] %s347
          %353 = dma.hbm_to_vmem [thread:$0]  %s6, 6144, %s348, [#allocation11], 384, 384, 24
        $region36: #{tpu_custom_call.1} parent=11 // pred_fallthru
          _
        // Predicated region
        $region37: #{tpu_custom_call.1} parent=11 // pred_check
          %p354 = pneg %p197
        $region38: #{tpu_custom_call.1} parent=11 // pred_check_branch
          %356 = sbr.rel (%p354) target = $region40
        $region39: #{tpu_custom_call.1} parent=11 // pred_region
          _
        $region40: #{tpu_custom_call.1} parent=11 // pred_fallthru
          _
        // Predicated region
        $region41: #{tpu_custom_call.1} parent=11 // pred_check
          %p357 = pneg %p218
        $region42: #{tpu_custom_call.1} parent=11 // pred_check_branch
          %359 = sbr.rel (%p357) target = $region44
        $region43: #{tpu_custom_call.1} parent=11 // pred_region
          _
        $region44: #{tpu_custom_call.1} parent=11 // pred_fallthru
          _
        // Predicated region
        $region45: #{tpu_custom_call.1} parent=11 // pred_check
          %p360 = pneg %p239
        $region46: #{tpu_custom_call.1} parent=11 // pred_check_branch
          %362 = sbr.rel (%p360) target = $region48
        $region47: #{tpu_custom_call.1} parent=11 // pred_region
          %s364 = ssub.s32 2048, 2048
          %365 = vsyncadd [#allocation14], %s364
          %s366 = sshll.u32 [#allocation13], 4
          %s367 = int_to_ptr.vmem [resolvable:$true] %s366
          %372 = dma.hbm_to_vmem [thread:$0]  %s9, 2048, %s367, [#allocation14], 128, 128, 8
        $region48: #{tpu_custom_call.1} parent=11 // pred_fallthru
          _
        // Predicated region
        $region49: #{tpu_custom_call.1} parent=11 // pred_check
          %p373 = pneg %p260
        $region50: #{tpu_custom_call.1} parent=11 // pred_check_branch
          %375 = sbr.rel (%p373) target = $region52
        $region51: #{tpu_custom_call.1} parent=11 // pred_region
          _
        $region52: #{tpu_custom_call.1} parent=11 // pred_fallthru
          _
      $region12: #{tpu_custom_call.1} parent=5 // pred_fallthru
        _
      %p376 = scmp.lt.s32.totalorder %s24, 8
      // Predicated region
      $region53: #{tpu_custom_call.1} parent=5 // pred_check
        %p377 = pneg %p376
      $region54: #{tpu_custom_call.1} parent=5 // pred_check_branch
        %379 = sbr.rel (%p377) target = $region56
      $region55: #{tpu_custom_call.1} parent=5 // pred_region
        // Predicated region
        $region57: #{tpu_custom_call.1} parent=55 // pred_check
          %p380 = pneg %p44
        $region58: #{tpu_custom_call.1} parent=55 // pred_check_branch
          %382 = sbr.rel (%p380) target = $region60
        $region59: #{tpu_custom_call.1} parent=55 // pred_region
          %s383 = sand.u32 %s34, 1
          %s384 = scalar_lea.sflag [#allocation5], %s383
          %s385 = sand.u32 %s34, 1
          %s386 = smul.addr %s385, 8
          %s387 = scalar_lea.vmem [#allocation4], %s386
          %s389 = ssub.s32 128, 128
          %390 = vsyncadd %s384, %s389
          %s391 = smul.addr %s24, 128
          %s392 = scalar_lea.hbm %s0, %s391
          %s394 = sshll.u32 %s387, 4
          %s395 = int_to_ptr.vmem [resolvable:$true] %s394
          %397 = dma.hbm_to_vmem [thread:$0]  %s392, 128, %s395, %s384
        $region60: #{tpu_custom_call.1} parent=55 // pred_fallthru
          _
      $region56: #{tpu_custom_call.1} parent=5 // pred_fallthru
        _
      %p398 = scmp.le.s32.totalorder 1, %s24
      %p399 = scmp.lt.s32.totalorder %s24, 9
      %p400 = pnand %p398, %p399
      %p401 = pneg %p400
      // Predicated region
      $region61: #{tpu_custom_call.1} parent=5 // pred_check
        _
      $region62: #{tpu_custom_call.1} parent=5 // pred_check_branch
        %403 = sbr.rel (%p400) target = $region64
      $region63: #{tpu_custom_call.1} parent=5 // pred_region
        %s404 = ssub.s32 %s24, 1
        %s405 = sand.u32 %s37, 1
        %s406 = scalar_lea.sflag [#allocation5], %s405
        %s407 = sand.u32 %s37, 1
        %s408 = smul.addr %s407, 8
        %s409 = scalar_lea.vmem [#allocation4], %s408
        // Predicated region
        $region65: #{tpu_custom_call.1} parent=63 // pred_check
          %p410 = pneg %p50
        $region66: #{tpu_custom_call.1} parent=63 // pred_check_branch
          %412 = sbr.rel (%p410) target = $region68
        $region67: #{tpu_custom_call.1} parent=63 // pred_region
          %413 = dma.done %s406, 128
        $region68: #{tpu_custom_call.1} parent=63 // pred_fallthru
          _
        // Predicated region
        $region69: #{tpu_custom_call.1} parent=63 // pred_check
          %p414 = pneg %p71
        $region70: #{tpu_custom_call.1} parent=63 // pred_check_branch
          %416 = sbr.rel (%p414) target = $region72
        $region71: #{tpu_custom_call.1} parent=63 // pred_region
          %417 = dma.done [#allocation8], 6144
        $region72: #{tpu_custom_call.1} parent=63 // pred_fallthru
          _
        // Predicated region
        $region73: #{tpu_custom_call.1} parent=63 // pred_check
          %p418 = pneg %p92
        $region74: #{tpu_custom_call.1} parent=63 // pred_check_branch
          %420 = sbr.rel (%p418) target = $region76
        $region75: #{tpu_custom_call.1} parent=63 // pred_region
          %421 = dma.done [#allocation8], 6144
        $region76: #{tpu_custom_call.1} parent=63 // pred_fallthru
          _
        // Predicated region
        $region77: #{tpu_custom_call.1} parent=63 // pred_check
          %p422 = pneg %p155
        $region78: #{tpu_custom_call.1} parent=63 // pred_check_branch
          %424 = sbr.rel (%p422) target = $region80
        $region79: #{tpu_custom_call.1} parent=63 // pred_region
          %425 = dma.done [#allocation11], 6144
        $region80: #{tpu_custom_call.1} parent=63 // pred_fallthru
          _
        // Predicated region
        $region81: #{tpu_custom_call.1} parent=63 // pred_check
          %p426 = pneg %p176
        $region82: #{tpu_custom_call.1} parent=63 // pred_check_branch
          %428 = sbr.rel (%p426) target = $region84
        $region83: #{tpu_custom_call.1} parent=63 // pred_region
          %429 = dma.done [#allocation11], 6144
        $region84: #{tpu_custom_call.1} parent=63 // pred_fallthru
          _
        // Predicated region
        $region85: #{tpu_custom_call.1} parent=63 // pred_check
          %p430 = pneg %p239
        $region86: #{tpu_custom_call.1} parent=63 // pred_check_branch
          %432 = sbr.rel (%p430) target = $region88
        $region87: #{tpu_custom_call.1} parent=63 // pred_region
          %433 = dma.done [#allocation14], 2048
        $region88: #{tpu_custom_call.1} parent=63 // pred_fallthru
          _
        %s434 = sand.u32 %s37, 1
        %s435 = scalar_lea.sflag [#allocation5], %s434
        %s436 = sand.u32 %s37, 1
        %s437 = smul.addr %s436, 8
        %s438 = scalar_lea.vmem [#allocation4], %s437
        %p439 = pneg %p50
        %p440 = pneg %p47
        %p441 = pneg %p71
        %p442 = pneg %p68
        %p443 = pneg %p92
        %p444 = pneg %p89
        %p445 = pneg %p113
        %p446 = pneg %p110
        %p447 = pneg %p134
        %p448 = pneg %p131
        %p449 = pneg %p155
        %p450 = pneg %p152
        %p451 = pneg %p176
        %p452 = pneg %p173
        %p453 = pneg %p197
        %p454 = pneg %p194
        %p455 = pneg %p218
        %p456 = pneg %p215
        %p457 = pneg %p239
        %p458 = pneg %p236
        %p459 = pneg %p260
        %p460 = pneg %p257
        %p461 = pneg %p281
        %p462 = pneg %p278
        %p463 = scmp.eq.s32.totalorder %s29, 0
        // Predicated region
        $region89: #{tpu_custom_call.1} parent=63 // pred_check
          %p464 = pneg %p463
        $region90: #{tpu_custom_call.1} parent=63 // pred_check_branch
          %466 = sbr.rel (%p464) target = $region92
        $region91: #{tpu_custom_call.1} parent=63 // pred_region
          %467 = vst [vmem:[#allocation2] sm:$0xff] 0.0
          %468 = vst [vmem:[#allocation3] sm:$0xff] 0.0
        $region92: #{tpu_custom_call.1} parent=63 // pred_fallthru
          _
        %v469 = vld [vmem:[%s409] sm:$0xff]
        %v470 = vld [vmem:[#allocation2] sm:$0xff]
        %v471 = vld [vmem:[#allocation7] sm:$0xff]
        %v472 = vld [vmem:[#allocation7 + $0x8] sm:$0xff]
        %v473 = vld [vmem:[#allocation7 + $0x10] sm:$0xff]
        %v474 = vld [vmem:[#allocation7 + $0x18] sm:$0xff]
        %v475 = vld [vmem:[#allocation7 + $0x20] sm:$0xff]
        %v476 = vld [vmem:[#allocation7 + $0x28] sm:$0xff]
        %v477 = vld [vmem:[#allocation7 + $0x30] sm:$0xff]
        %v478 = vld [vmem:[#allocation7 + $0x38] sm:$0xff]
        %v479 = vld [vmem:[#allocation7 + $0x40] sm:$0xff]
        %v480 = vld [vmem:[#allocation7 + $0x48] sm:$0xff]
        %v481 = vld [vmem:[#allocation7 + $0x50] sm:$0xff]
        %v482 = vld [vmem:[#allocation7 + $0x58] sm:$0xff]
        %v483 = vld [vmem:[#allocation7 + $0x60] sm:$0xff]
        %v484 = vld [vmem:[#allocation7 + $0x68] sm:$0xff]
        %v485 = vld [vmem:[#allocation7 + $0x70] sm:$0xff]
        %v486 = vld [vmem:[#allocation7 + $0x78] sm:$0xff]
        %v487 = vld [vmem:[#allocation7 + $0x80] sm:$0xff]
        %v488 = vld [vmem:[#allocation7 + $0x88] sm:$0xff]
        %v489 = vld [vmem:[#allocation7 + $0x90] sm:$0xff]
        %v490 = vld [vmem:[#allocation7 + $0x98] sm:$0xff]
        %v491 = vld [vmem:[#allocation7 + $0xa0] sm:$0xff]
        %v492 = vld [vmem:[#allocation7 + $0xa8] sm:$0xff]
        %v493 = vld [vmem:[#allocation7 + $0xb0] sm:$0xff]
        %v494 = vld [vmem:[#allocation7 + $0xb8] sm:$0xff]
        %v495 = vld [vmem:[#allocation7 + $0xc0] sm:$0xff]
        %v496 = vld [vmem:[#allocation7 + $0xc8] sm:$0xff]
        %v497 = vld [vmem:[#allocation7 + $0xd0] sm:$0xff]
        %v498 = vld [vmem:[#allocation7 + $0xd8] sm:$0xff]
        %v499 = vld [vmem:[#allocation7 + $0xe0] sm:$0xff]
        %v500 = vld [vmem:[#allocation7 + $0xe8] sm:$0xff]
        %v501 = vld [vmem:[#allocation7 + $0xf0] sm:$0xff]
        %v502 = vld [vmem:[#allocation7 + $0xf8] sm:$0xff]
        %v503 = vld [vmem:[#allocation7 + $0x100] sm:$0xff]
        %v504 = vld [vmem:[#allocation7 + $0x108] sm:$0xff]
        %v505 = vld [vmem:[#allocation7 + $0x110] sm:$0xff]
        %v506 = vld [vmem:[#allocation7 + $0x118] sm:$0xff]
        %v507 = vld [vmem:[#allocation7 + $0x120] sm:$0xff]
        %v508 = vld [vmem:[#allocation7 + $0x128] sm:$0xff]
        %v509 = vld [vmem:[#allocation7 + $0x130] sm:$0xff]
        %v510 = vld [vmem:[#allocation7 + $0x138] sm:$0xff]
        %v511 = vld [vmem:[#allocation7 + $0x140] sm:$0xff]
        %v512 = vld [vmem:[#allocation7 + $0x148] sm:$0xff]
        %v513 = vld [vmem:[#allocation7 + $0x150] sm:$0xff]
        %v514 = vld [vmem:[#allocation7 + $0x158] sm:$0xff]
        %v515 = vld [vmem:[#allocation7 + $0x160] sm:$0xff]
        %v516 = vld [vmem:[#allocation7 + $0x168] sm:$0xff]
        %v517 = vld [vmem:[#allocation7 + $0x170] sm:$0xff]
        %v518 = vld [vmem:[#allocation7 + $0x178] sm:$0xff]
        %v519 = vld [vmem:[#allocation9] sm:$0xff]
        %v520 = vld [vmem:[#allocation9 + $0x8] sm:$0xff]
        %v521 = vld [vmem:[#allocation9 + $0x10] sm:$0xff]
        %v522 = vld [vmem:[#allocation9 + $0x18] sm:$0xff]
        %v523 = vld [vmem:[#allocation9 + $0x20] sm:$0xff]
        %v524 = vld [vmem:[#allocation9 + $0x28] sm:$0xff]
        %v525 = vld [vmem:[#allocation9 + $0x30] sm:$0xff]
        %v526 = vld [vmem:[#allocation9 + $0x38] sm:$0xff]
        %v527 = vld [vmem:[#allocation9 + $0x40] sm:$0xff]
        %v528 = vld [vmem:[#allocation9 + $0x48] sm:$0xff]
        %v529 = vld [vmem:[#allocation9 + $0x50] sm:$0xff]
        %v530 = vld [vmem:[#allocation9 + $0x58] sm:$0xff]
        %v531 = vld [vmem:[#allocation9 + $0x60] sm:$0xff]
        %v532 = vld [vmem:[#allocation9 + $0x68] sm:$0xff]
        %v533 = vld [vmem:[#allocation9 + $0x70] sm:$0xff]
        %v534 = vld [vmem:[#allocation9 + $0x78] sm:$0xff]
        %v535 = vld [vmem:[#allocation9 + $0x80] sm:$0xff]
        %v536 = vld [vmem:[#allocation9 + $0x88] sm:$0xff]
        %v537 = vld [vmem:[#allocation9 + $0x90] sm:$0xff]
        %v538 = vld [vmem:[#allocation9 + $0x98] sm:$0xff]
        %v539 = vld [vmem:[#allocation9 + $0xa0] sm:$0xff]
        %v540 = vld [vmem:[#allocation9 + $0xa8] sm:$0xff]
        %v541 = vld [vmem:[#allocation9 + $0xb0] sm:$0xff]
        %v542 = vld [vmem:[#allocation9 + $0xb8] sm:$0xff]
        %v543 = vld [vmem:[#allocation9 + $0xc0] sm:$0xff]
        %v544 = vld [vmem:[#allocation9 + $0xc8] sm:$0xff]
        %v545 = vld [vmem:[#allocation9 + $0xd0] sm:$0xff]
        %v546 = vld [vmem:[#allocation9 + $0xd8] sm:$0xff]
        %v547 = vld [vmem:[#allocation9 + $0xe0] sm:$0xff]
        %v548 = vld [vmem:[#allocation9 + $0xe8] sm:$0xff]
        %v549 = vld [vmem:[#allocation9 + $0xf0] sm:$0xff]
        %v550 = vld [vmem:[#allocation9 + $0xf8] sm:$0xff]
        %v551 = vld [vmem:[#allocation9 + $0x100] sm:$0xff]
        %v552 = vld [vmem:[#allocation9 + $0x108] sm:$0xff]
        %v553 = vld [vmem:[#allocation9 + $0x110] sm:$0xff]
        %v554 = vld [vmem:[#allocation9 + $0x118] sm:$0xff]
        %v555 = vld [vmem:[#allocation9 + $0x120] sm:$0xff]
        %v556 = vld [vmem:[#allocation9 + $0x128] sm:$0xff]
        %v557 = vld [vmem:[#allocation9 + $0x130] sm:$0xff]
        %v558 = vld [vmem:[#allocation9 + $0x138] sm:$0xff]
        %v559 = vld [vmem:[#allocation9 + $0x140] sm:$0xff]
        %v560 = vld [vmem:[#allocation9 + $0x148] sm:$0xff]
        %v561 = vld [vmem:[#allocation9 + $0x150] sm:$0xff]
        %v562 = vld [vmem:[#allocation9 + $0x158] sm:$0xff]
        %v563 = vld [vmem:[#allocation9 + $0x160] sm:$0xff]
        %v564 = vld [vmem:[#allocation9 + $0x168] sm:$0xff]
        %v565 = vld [vmem:[#allocation9 + $0x170] sm:$0xff]
        %v566 = vld [vmem:[#allocation9 + $0x178] sm:$0xff]
        %v567 = vld [vmem:[%s3] sm:$0x7]
        %v568 = vld [vmem:[%s4] sm:$0x7]
        %v570 = vlaneseq
        %v571 = vshrl.u32 %v570, 7
        %v572 = vsub.s32 0, %v571
        %v573 = vrot.slane %v567, %v572
        %v574 = vlaneseq
        %v575 = vshrl.u32 %v574, 7
        %v576 = vsub.s32 1, %v575
        %v577 = vrot.slane %v567, %v576
        %v578 = vlaneseq
        %v579 = vshrl.u32 %v578, 7
        %v580 = vsub.s32 2, %v579
        %v581 = vrot.slane %v567, %v580
        %585 = vmatprep.subr.mxu0 %v472
        %586 = vmatpush1.msra.mxu0 %v471
        %587 = vmatprep.subr.mxu0 %v475
        %588 = vmatpush1.msra.mxu0 %v474
        %589 = vmatprep.subr.mxu0 %v478
        %590 = vmatpush1.msra.mxu0 %v477
        %591 = vmatprep.subr.mxu0 %v481
        %592 = vmatpush1.msra.mxu0 %v480
        %593 = vmatprep.subr.mxu0 %v484
        %594 = vmatpush1.msra.mxu0 %v483
        %595 = vmatprep.subr.mxu0 %v487
        %596 = vmatpush1.msra.mxu0 %v486
        %597 = vmatprep.subr.mxu0 %v490
        %598 = vmatpush1.msra.mxu0 %v489
        %599 = vmatprep.subr.mxu0 %v493
        %600 = vmatpush1.msra.mxu0 %v492
        %601 = vmatprep.subr.mxu0 %v496
        %602 = vmatpush1.msra.mxu0 %v495
        %603 = vmatprep.subr.mxu0 %v499
        %604 = vmatpush1.msra.mxu0 %v498
        %605 = vmatprep.subr.mxu0 %v502
        %606 = vmatpush1.msra.mxu0 %v501
        %607 = vmatprep.subr.mxu0 %v505
        %608 = vmatpush1.msra.mxu0 %v504
        %609 = vmatprep.subr.mxu0 %v508
        %610 = vmatpush1.msra.mxu0 %v507
        %611 = vmatprep.subr.mxu0 %v511
        %612 = vmatpush1.msra.mxu0 %v510
        %613 = vmatprep.subr.mxu0 %v514
        %614 = vmatpush1.msra.mxu0 %v513
        %615 = vmatprep.subr.mxu0 %v517
        %616 = vmatpush1.msra.mxu0 %v516
        %617 = vmatprep.subr.mxu0 0.0
        %618 = vmatpush1.msra.mxu0 0.0
        %619 = vmatprep.subr.mxu0 0.0
        %620 = vmatpush1.msra.mxu0 0.0
        %621 = vmatprep.subr.mxu0 0.0
        %622 = vmatpush1.msra.mxu0 0.0
        %623 = vmatprep.subr.mxu0 0.0
        %624 = vmatpush1.msra.mxu0 0.0
        %625 = vmatprep.subr.mxu0 0.0
        %626 = vmatpush1.msra.mxu0 0.0
        %627 = vmatprep.subr.mxu0 0.0
        %628 = vmatpush1.msra.mxu0 0.0
        %629 = vmatprep.subr.mxu0 0.0
        %630 = vmatpush1.msra.mxu0 0.0
        %631 = vmatprep.subr.mxu0 0.0
        %632 = vmatpush1.msra.mxu0 0.0
        %633 = vmatprep.subr.mxu0 0.0
        %634 = vmatpush1.msra.mxu0 0.0
        %635 = vmatprep.subr.mxu0 0.0
        %636 = vmatpush1.msra.mxu0 0.0
        %637 = vmatprep.subr.mxu0 0.0
        %638 = vmatpush1.msra.mxu0 0.0
        %639 = vmatprep.subr.mxu0 0.0
        %640 = vmatpush1.msra.mxu0 0.0
        %641 = vmatprep.subr.mxu0 0.0
        %642 = vmatpush1.msra.mxu0 0.0
        %643 = vmatprep.subr.mxu0 0.0
        %644 = vmatpush1.msra.mxu0 0.0
        %645 = vmatprep.subr.mxu0 0.0
        %646 = vmatpush1.msra.mxu0 0.0
        %647 = vmatprep.subr.mxu0 0.0
        %648 = vmatpush1.msra.mxu0 0.0
        %649 = vmatprep.mubr.f32.mxu0 0.0
        %650 = vmatmul.mubr.f32.gmra.mrb[0].mxu0 %v469
        %v651 = vpop.f32.mrb[0].mxu0
        %v652 = vadd.f32 %v573, %v651
        %v653 = vpop.f32.mrb[0].mxu0
        %v654 = vadd.f32 %v577, %v653
        %655 = vdwg.mxu0
        %656 = vmatprep.subr.mxu0 0.0
        %657 = vmatpush1.msra.mxu0 %v473
        %658 = vmatprep.subr.mxu0 0.0
        %659 = vmatpush1.msra.mxu0 %v476
        %660 = vmatprep.subr.mxu0 0.0
        %661 = vmatpush1.msra.mxu0 %v479
        %662 = vmatprep.subr.mxu0 0.0
        %663 = vmatpush1.msra.mxu0 %v482
        %664 = vmatprep.subr.mxu0 0.0
        %665 = vmatpush1.msra.mxu0 %v485
        %666 = vmatprep.subr.mxu0 0.0
        %667 = vmatpush1.msra.mxu0 %v488
        %668 = vmatprep.subr.mxu0 0.0
        %669 = vmatpush1.msra.mxu0 %v491
        %670 = vmatprep.subr.mxu0 0.0
        %671 = vmatpush1.msra.mxu0 %v494
        %672 = vmatprep.subr.mxu0 0.0
        %673 = vmatpush1.msra.mxu0 %v497
        %674 = vmatprep.subr.mxu0 0.0
        %675 = vmatpush1.msra.mxu0 %v500
        %676 = vmatprep.subr.mxu0 0.0
        %677 = vmatpush1.msra.mxu0 %v503
        %678 = vmatprep.subr.mxu0 0.0
        %679 = vmatpush1.msra.mxu0 %v506
        %680 = vmatprep.subr.mxu0 0.0
        %681 = vmatpush1.msra.mxu0 %v509
        %682 = vmatprep.subr.mxu0 0.0
        %683 = vmatpush1.msra.mxu0 %v512
        %684 = vmatprep.subr.mxu0 0.0
        %685 = vmatpush1.msra.mxu0 %v515
        %686 = vmatprep.subr.mxu0 0.0
        %687 = vmatpush1.msra.mxu0 %v518
        %688 = vmatprep.subr.mxu0 0.0
        %689 = vmatpush1.msra.mxu0 0.0
        %690 = vmatprep.subr.mxu0 0.0
        %691 = vmatpush1.msra.mxu0 0.0
        %692 = vmatprep.subr.mxu0 0.0
        %693 = vmatpush1.msra.mxu0 0.0
        %694 = vmatprep.subr.mxu0 0.0
        %695 = vmatpush1.msra.mxu0 0.0
        %696 = vmatprep.subr.mxu0 0.0
        %697 = vmatpush1.msra.mxu0 0.0
        %698 = vmatprep.subr.mxu0 0.0
        %699 = vmatpush1.msra.mxu0 0.0
        %700 = vmatprep.subr.mxu0 0.0
        %701 = vmatpush1.msra.mxu0 0.0
        %702 = vmatprep.subr.mxu0 0.0
        %703 = vmatpush1.msra.mxu0 0.0
        %704 = vmatprep.subr.mxu0 0.0
        %705 = vmatpush1.msra.mxu0 0.0
        %706 = vmatprep.subr.mxu0 0.0
        %707 = vmatpush1.msra.mxu0 0.0
        %708 = vmatprep.subr.mxu0 0.0
        %709 = vmatpush1.msra.mxu0 0.0
        %710 = vmatprep.subr.mxu0 0.0
        %711 = vmatpush1.msra.mxu0 0.0
        %712 = vmatprep.subr.mxu0 0.0
        %713 = vmatpush1.msra.mxu0 0.0
        %714 = vmatprep.subr.mxu0 0.0
        %715 = vmatpush1.msra.mxu0 0.0
        %716 = vmatprep.subr.mxu0 0.0
        %717 = vmatpush1.msra.mxu0 0.0
        %718 = vmatprep.subr.mxu0 0.0
        %719 = vmatpush1.msra.mxu0 0.0
        %720 = vmatprep.mubr.f32.mxu0 0.0
        %721 = vmatmul.mubr.f32.gmra.mrb[0].mxu0 %v469
        %v722 = vpop.f32.mrb[0].mxu0
        %v723 = vadd.f32 %v581, %v722
        %v724 = vpop.f32.mrb[0].mxu0
        %725 = vdwg.mxu0
        %v727 = vlaneseq
        %v728 = vshrl.u32 %v727, 7
        %v729 = vsub.s32 0, %v728
        %v730 = vrot.slane %v568, %v729
        %v731 = vlaneseq
        %v732 = vshrl.u32 %v731, 7
        %v733 = vsub.s32 1, %v732
        %v734 = vrot.slane %v568, %v733
        %v735 = vlaneseq
        %v736 = vshrl.u32 %v735, 7
        %v737 = vsub.s32 2, %v736
        %v738 = vrot.slane %v568, %v737
        %742 = vmatprep.subr.mxu0 %v520
        %743 = vmatpush1.msra.mxu0 %v519
        %744 = vmatprep.subr.mxu0 %v523
        %745 = vmatpush1.msra.mxu0 %v522
        %746 = vmatprep.subr.mxu0 %v526
        %747 = vmatpush1.msra.mxu0 %v525
        %748 = vmatprep.subr.mxu0 %v529
        %749 = vmatpush1.msra.mxu0 %v528
        %750 = vmatprep.subr.mxu0 %v532
        %751 = vmatpush1.msra.mxu0 %v531
        %752 = vmatprep.subr.mxu0 %v535
        %753 = vmatpush1.msra.mxu0 %v534
        %754 = vmatprep.subr.mxu0 %v538
        %755 = vmatpush1.msra.mxu0 %v537
        %756 = vmatprep.subr.mxu0 %v541
        %757 = vmatpush1.msra.mxu0 %v540
        %758 = vmatprep.subr.mxu0 %v544
        %759 = vmatpush1.msra.mxu0 %v543
        %760 = vmatprep.subr.mxu0 %v547
        %761 = vmatpush1.msra.mxu0 %v546
        %762 = vmatprep.subr.mxu0 %v550
        %763 = vmatpush1.msra.mxu0 %v549
        %764 = vmatprep.subr.mxu0 %v553
        %765 = vmatpush1.msra.mxu0 %v552
        %766 = vmatprep.subr.mxu0 %v556
        %767 = vmatpush1.msra.mxu0 %v555
        %768 = vmatprep.subr.mxu0 %v559
        %769 = vmatpush1.msra.mxu0 %v558
        %770 = vmatprep.subr.mxu0 %v562
        %771 = vmatpush1.msra.mxu0 %v561
        %772 = vmatprep.subr.mxu0 %v565
        %773 = vmatpush1.msra.mxu0 %v564
        %774 = vmatprep.subr.mxu0 0.0
        %775 = vmatpush1.msra.mxu0 0.0
        %776 = vmatprep.subr.mxu0 0.0
        %777 = vmatpush1.msra.mxu0 0.0
        %778 = vmatprep.subr.mxu0 0.0
        %779 = vmatpush1.msra.mxu0 0.0
        %780 = vmatprep.subr.mxu0 0.0
        %781 = vmatpush1.msra.mxu0 0.0
        %782 = vmatprep.subr.mxu0 0.0
        %783 = vmatpush1.msra.mxu0 0.0
        %784 = vmatprep.subr.mxu0 0.0
        %785 = vmatpush1.msra.mxu0 0.0
        %786 = vmatprep.subr.mxu0 0.0
        %787 = vmatpush1.msra.mxu0 0.0
        %788 = vmatprep.subr.mxu0 0.0
        %789 = vmatpush1.msra.mxu0 0.0
        %790 = vmatprep.subr.mxu0 0.0
        %791 = vmatpush1.msra.mxu0 0.0
        %792 = vmatprep.subr.mxu0 0.0
        %793 = vmatpush1.msra.mxu0 0.0
        %794 = vmatprep.subr.mxu0 0.0
        %795 = vmatpush1.msra.mxu0 0.0
        %796 = vmatprep.subr.mxu0 0.0
        %797 = vmatpush1.msra.mxu0 0.0
        %798 = vmatprep.subr.mxu0 0.0
        %799 = vmatpush1.msra.mxu0 0.0
        %800 = vmatprep.subr.mxu0 0.0
        %801 = vmatpush1.msra.mxu0 0.0
        %802 = vmatprep.subr.mxu0 0.0
        %803 = vmatpush1.msra.mxu0 0.0
        %804 = vmatprep.subr.mxu0 0.0
        %805 = vmatpush1.msra.mxu0 0.0
        %806 = vmatprep.mubr.f32.mxu0 0.0
        %807 = vmatmul.mubr.f32.gmra.mrb[0].mxu0 %v470
        %v808 = vpop.f32.mrb[0].mxu0
        %v809 = vadd.f32 %v730, %v808
        %v810 = vpop.f32.mrb[0].mxu0
        %v811 = vadd.f32 %v734, %v810
        %812 = vdwg.mxu0
        %813 = vmatprep.subr.mxu0 0.0
        %814 = vmatpush1.msra.mxu0 %v521
        %815 = vmatprep.subr.mxu0 0.0
        %816 = vmatpush1.msra.mxu0 %v524
        %817 = vmatprep.subr.mxu0 0.0
        %818 = vmatpush1.msra.mxu0 %v527
        %819 = vmatprep.subr.mxu0 0.0
        %820 = vmatpush1.msra.mxu0 %v530
        %821 = vmatprep.subr.mxu0 0.0
        %822 = vmatpush1.msra.mxu0 %v533
        %823 = vmatprep.subr.mxu0 0.0
        %824 = vmatpush1.msra.mxu0 %v536
        %825 = vmatprep.subr.mxu0 0.0
        %826 = vmatpush1.msra.mxu0 %v539
        %827 = vmatprep.subr.mxu0 0.0
        %828 = vmatpush1.msra.mxu0 %v542
        %829 = vmatprep.subr.mxu0 0.0
        %830 = vmatpush1.msra.mxu0 %v545
        %831 = vmatprep.subr.mxu0 0.0
        %832 = vmatpush1.msra.mxu0 %v548
        %833 = vmatprep.subr.mxu0 0.0
        %834 = vmatpush1.msra.mxu0 %v551
        %835 = vmatprep.subr.mxu0 0.0
        %836 = vmatpush1.msra.mxu0 %v554
        %837 = vmatprep.subr.mxu0 0.0
        %838 = vmatpush1.msra.mxu0 %v557
        %839 = vmatprep.subr.mxu0 0.0
        %840 = vmatpush1.msra.mxu0 %v560
        %841 = vmatprep.subr.mxu0 0.0
        %842 = vmatpush1.msra.mxu0 %v563
        %843 = vmatprep.subr.mxu0 0.0
        %844 = vmatpush1.msra.mxu0 %v566
        %845 = vmatprep.subr.mxu0 0.0
        %846 = vmatpush1.msra.mxu0 0.0
        %847 = vmatprep.subr.mxu0 0.0
        %848 = vmatpush1.msra.mxu0 0.0
        %849 = vmatprep.subr.mxu0 0.0
        %850 = vmatpush1.msra.mxu0 0.0
        %851 = vmatprep.subr.mxu0 0.0
        %852 = vmatpush1.msra.mxu0 0.0
        %853 = vmatprep.subr.mxu0 0.0
        %854 = vmatpush1.msra.mxu0 0.0
        %855 = vmatprep.subr.mxu0 0.0
        %856 = vmatpush1.msra.mxu0 0.0
        %857 = vmatprep.subr.mxu0 0.0
        %858 = vmatpush1.msra.mxu0 0.0
        %859 = vmatprep.subr.mxu0 0.0
        %860 = vmatpush1.msra.mxu0 0.0
        %861 = vmatprep.subr.mxu0 0.0
        %862 = vmatpush1.msra.mxu0 0.0
        %863 = vmatprep.subr.mxu0 0.0
        %864 = vmatpush1.msra.mxu0 0.0
        %865 = vmatprep.subr.mxu0 0.0
        %866 = vmatpush1.msra.mxu0 0.0
        %867 = vmatprep.subr.mxu0 0.0
        %868 = vmatpush1.msra.mxu0 0.0
        %869 = vmatprep.subr.mxu0 0.0
        %870 = vmatpush1.msra.mxu0 0.0
        %871 = vmatprep.subr.mxu0 0.0
        %872 = vmatpush1.msra.mxu0 0.0
        %873 = vmatprep.subr.mxu0 0.0
        %874 = vmatpush1.msra.mxu0 0.0
        %875 = vmatprep.subr.mxu0 0.0
        %876 = vmatpush1.msra.mxu0 0.0
        %877 = vmatprep.mubr.f32.mxu0 0.0
        %878 = vmatmul.mubr.f32.gmra.mrb[0].mxu0 %v470
        %v879 = vpop.f32.mrb[0].mxu0
        %v880 = vadd.f32 %v738, %v879
        %v881 = vpop.f32.mrb[0].mxu0
        %882 = vdwg.mxu0
        %v883 = vadd.f32 %v652, %v809
        %v884 = vxor.u32 %v883, 2147483648
        %v885 = vmul.f32 %v884, 1.442695
        %v886 = vpow.pop %v885
        %v887 = vadd.f32 %v886, 1.0
        %v888 = vrcp.pop %v887
        %v889 = vmul.f32 1.0, %v888
        %v890 = vadd.f32 %v654, %v811
        %v891 = vxor.u32 %v890, 2147483648
        %v892 = vmul.f32 %v891, 1.442695
        %v893 = vpow.pop %v892
        %v894 = vadd.f32 %v893, 1.0
        %v895 = vrcp.pop %v894
        %v896 = vmul.f32 1.0, %v895
        %v897 = vmul.f32 %v889, %v880
        %v898 = vadd.f32 %v723, %v897
        %v899 = vtanh.pop %v898
        %v900 = vsub.f32 1.0, %v896
        %v901 = vmul.f32 %v900, %v899
        %v902 = vmul.f32 %v896, %v470
        %v903 = vadd.f32 %v901, %v902
        %904 = vst [vmem:[#allocation2] sm:$0xff] %v903
        %v905 = vld [vmem:[#allocation3] sm:$0xff]
        %v906 = vld [vmem:[#allocation10] sm:$0xff]
        %v907 = vld [vmem:[#allocation10 + $0x8] sm:$0xff]
        %v908 = vld [vmem:[#allocation10 + $0x10] sm:$0xff]
        %v909 = vld [vmem:[#allocation10 + $0x18] sm:$0xff]
        %v910 = vld [vmem:[#allocation10 + $0x20] sm:$0xff]
        %v911 = vld [vmem:[#allocation10 + $0x28] sm:$0xff]
        %v912 = vld [vmem:[#allocation10 + $0x30] sm:$0xff]
        %v913 = vld [vmem:[#allocation10 + $0x38] sm:$0xff]
        %v914 = vld [vmem:[#allocation10 + $0x40] sm:$0xff]
        %v915 = vld [vmem:[#allocation10 + $0x48] sm:$0xff]
        %v916 = vld [vmem:[#allocation10 + $0x50] sm:$0xff]
        %v917 = vld [vmem:[#allocation10 + $0x58] sm:$0xff]
        %v918 = vld [vmem:[#allocation10 + $0x60] sm:$0xff]
        %v919 = vld [vmem:[#allocation10 + $0x68] sm:$0xff]
        %v920 = vld [vmem:[#allocation10 + $0x70] sm:$0xff]
        %v921 = vld [vmem:[#allocation10 + $0x78] sm:$0xff]
        %v922 = vld [vmem:[#allocation10 + $0x80] sm:$0xff]
        %v923 = vld [vmem:[#allocation10 + $0x88] sm:$0xff]
        %v924 = vld [vmem:[#allocation10 + $0x90] sm:$0xff]
        %v925 = vld [vmem:[#allocation10 + $0x98] sm:$0xff]
        %v926 = vld [vmem:[#allocation10 + $0xa0] sm:$0xff]
        %v927 = vld [vmem:[#allocation10 + $0xa8] sm:$0xff]
        %v928 = vld [vmem:[#allocation10 + $0xb0] sm:$0xff]
        %v929 = vld [vmem:[#allocation10 + $0xb8] sm:$0xff]
        %v930 = vld [vmem:[#allocation10 + $0xc0] sm:$0xff]
        %v931 = vld [vmem:[#allocation10 + $0xc8] sm:$0xff]
        %v932 = vld [vmem:[#allocation10 + $0xd0] sm:$0xff]
        %v933 = vld [vmem:[#allocation10 + $0xd8] sm:$0xff]
        %v934 = vld [vmem:[#allocation10 + $0xe0] sm:$0xff]
        %v935 = vld [vmem:[#allocation10 + $0xe8] sm:$0xff]
        %v936 = vld [vmem:[#allocation10 + $0xf0] sm:$0xff]
        %v937 = vld [vmem:[#allocation10 + $0xf8] sm:$0xff]
        %v938 = vld [vmem:[#allocation10 + $0x100] sm:$0xff]
        %v939 = vld [vmem:[#allocation10 + $0x108] sm:$0xff]
        %v940 = vld [vmem:[#allocation10 + $0x110] sm:$0xff]
        %v941 = vld [vmem:[#allocation10 + $0x118] sm:$0xff]
        %v942 = vld [vmem:[#allocation10 + $0x120] sm:$0xff]
        %v943 = vld [vmem:[#allocation10 + $0x128] sm:$0xff]
        %v944 = vld [vmem:[#allocation10 + $0x130] sm:$0xff]
        %v945 = vld [vmem:[#allocation10 + $0x138] sm:$0xff]
        %v946 = vld [vmem:[#allocation10 + $0x140] sm:$0xff]
        %v947 = vld [vmem:[#allocation10 + $0x148] sm:$0xff]
        %v948 = vld [vmem:[#allocation10 + $0x150] sm:$0xff]
        %v949 = vld [vmem:[#allocation10 + $0x158] sm:$0xff]
        %v950 = vld [vmem:[#allocation10 + $0x160] sm:$0xff]
        %v951 = vld [vmem:[#allocation10 + $0x168] sm:$0xff]
        %v952 = vld [vmem:[#allocation10 + $0x170] sm:$0xff]
        %v953 = vld [vmem:[#allocation10 + $0x178] sm:$0xff]
        %v954 = vld [vmem:[#allocation12] sm:$0xff]
        %v955 = vld [vmem:[#allocation12 + $0x8] sm:$0xff]
        %v956 = vld [vmem:[#allocation12 + $0x10] sm:$0xff]
        %v957 = vld [vmem:[#allocation12 + $0x18] sm:$0xff]
        %v958 = vld [vmem:[#allocation12 + $0x20] sm:$0xff]
        %v959 = vld [vmem:[#allocation12 + $0x28] sm:$0xff]
        %v960 = vld [vmem:[#allocation12 + $0x30] sm:$0xff]
        %v961 = vld [vmem:[#allocation12 + $0x38] sm:$0xff]
        %v962 = vld [vmem:[#allocation12 + $0x40] sm:$0xff]
        %v963 = vld [vmem:[#allocation12 + $0x48] sm:$0xff]
        %v964 = vld [vmem:[#allocation12 + $0x50] sm:$0xff]
        %v965 = vld [vmem:[#allocation12 + $0x58] sm:$0xff]
        %v966 = vld [vmem:[#allocation12 + $0x60] sm:$0xff]
        %v967 = vld [vmem:[#allocation12 + $0x68] sm:$0xff]
        %v968 = vld [vmem:[#allocation12 + $0x70] sm:$0xff]
        %v969 = vld [vmem:[#allocation12 + $0x78] sm:$0xff]
        %v970 = vld [vmem:[#allocation12 + $0x80] sm:$0xff]
        %v971 = vld [vmem:[#allocation12 + $0x88] sm:$0xff]
        %v972 = vld [vmem:[#allocation12 + $0x90] sm:$0xff]
        %v973 = vld [vmem:[#allocation12 + $0x98] sm:$0xff]
        %v974 = vld [vmem:[#allocation12 + $0xa0] sm:$0xff]
        %v975 = vld [vmem:[#allocation12 + $0xa8] sm:$0xff]
        %v976 = vld [vmem:[#allocation12 + $0xb0] sm:$0xff]
        %v977 = vld [vmem:[#allocation12 + $0xb8] sm:$0xff]
        %v978 = vld [vmem:[#allocation12 + $0xc0] sm:$0xff]
        %v979 = vld [vmem:[#allocation12 + $0xc8] sm:$0xff]
        %v980 = vld [vmem:[#allocation12 + $0xd0] sm:$0xff]
        %v981 = vld [vmem:[#allocation12 + $0xd8] sm:$0xff]
        %v982 = vld [vmem:[#allocation12 + $0xe0] sm:$0xff]
        %v983 = vld [vmem:[#allocation12 + $0xe8] sm:$0xff]
        %v984 = vld [vmem:[#allocation12 + $0xf0] sm:$0xff]
        %v985 = vld [vmem:[#allocation12 + $0xf8] sm:$0xff]
        %v986 = vld [vmem:[#allocation12 + $0x100] sm:$0xff]
        %v987 = vld [vmem:[#allocation12 + $0x108] sm:$0xff]
        %v988 = vld [vmem:[#allocation12 + $0x110] sm:$0xff]
        %v989 = vld [vmem:[#allocation12 + $0x118] sm:$0xff]
        %v990 = vld [vmem:[#allocation12 + $0x120] sm:$0xff]
        %v991 = vld [vmem:[#allocation12 + $0x128] sm:$0xff]
        %v992 = vld [vmem:[#allocation12 + $0x130] sm:$0xff]
        %v993 = vld [vmem:[#allocation12 + $0x138] sm:$0xff]
        %v994 = vld [vmem:[#allocation12 + $0x140] sm:$0xff]
        %v995 = vld [vmem:[#allocation12 + $0x148] sm:$0xff]
        %v996 = vld [vmem:[#allocation12 + $0x150] sm:$0xff]
        %v997 = vld [vmem:[#allocation12 + $0x158] sm:$0xff]
        %v998 = vld [vmem:[#allocation12 + $0x160] sm:$0xff]
        %v999 = vld [vmem:[#allocation12 + $0x168] sm:$0xff]
        %v1000 = vld [vmem:[#allocation12 + $0x170] sm:$0xff]
        %v1001 = vld [vmem:[#allocation12 + $0x178] sm:$0xff]
        %v1002 = vld [vmem:[%s7] sm:$0x7]
        %v1003 = vld [vmem:[%s8] sm:$0x7]
        %v1005 = vlaneseq
        %v1006 = vshrl.u32 %v1005, 7
        %v1007 = vsub.s32 0, %v1006
        %v1008 = vrot.slane %v1002, %v1007
        %v1009 = vlaneseq
        %v1010 = vshrl.u32 %v1009, 7
        %v1011 = vsub.s32 1, %v1010
        %v1012 = vrot.slane %v1002, %v1011
        %v1013 = vlaneseq
        %v1014 = vshrl.u32 %v1013, 7
        %v1015 = vsub.s32 2, %v1014
        %v1016 = vrot.slane %v1002, %v1015
        %1020 = vmatprep.subr.mxu0 %v907
        %1021 = vmatpush1.msra.mxu0 %v906
        %1022 = vmatprep.subr.mxu0 %v910
        %1023 = vmatpush1.msra.mxu0 %v909
        %1024 = vmatprep.subr.mxu0 %v913
        %1025 = vmatpush1.msra.mxu0 %v912
        %1026 = vmatprep.subr.mxu0 %v916
        %1027 = vmatpush1.msra.mxu0 %v915
        %1028 = vmatprep.subr.mxu0 %v919
        %1029 = vmatpush1.msra.mxu0 %v918
        %1030 = vmatprep.subr.mxu0 %v922
        %1031 = vmatpush1.msra.mxu0 %v921
        %1032 = vmatprep.subr.mxu0 %v925
        %1033 = vmatpush1.msra.mxu0 %v924
        %1034 = vmatprep.subr.mxu0 %v928
        %1035 = vmatpush1.msra.mxu0 %v927
        %1036 = vmatprep.subr.mxu0 %v931
        %1037 = vmatpush1.msra.mxu0 %v930
        %1038 = vmatprep.subr.mxu0 %v934
        %1039 = vmatpush1.msra.mxu0 %v933
        %1040 = vmatprep.subr.mxu0 %v937
        %1041 = vmatpush1.msra.mxu0 %v936
        %1042 = vmatprep.subr.mxu0 %v940
        %1043 = vmatpush1.msra.mxu0 %v939
        %1044 = vmatprep.subr.mxu0 %v943
        %1045 = vmatpush1.msra.mxu0 %v942
        %1046 = vmatprep.subr.mxu0 %v946
        %1047 = vmatpush1.msra.mxu0 %v945
        %1048 = vmatprep.subr.mxu0 %v949
        %1049 = vmatpush1.msra.mxu0 %v948
        %1050 = vmatprep.subr.mxu0 %v952
        %1051 = vmatpush1.msra.mxu0 %v951
        %1052 = vmatprep.subr.mxu0 0.0
        %1053 = vmatpush1.msra.mxu0 0.0
        %1054 = vmatprep.subr.mxu0 0.0
        %1055 = vmatpush1.msra.mxu0 0.0
        %1056 = vmatprep.subr.mxu0 0.0
        %1057 = vmatpush1.msra.mxu0 0.0
        %1058 = vmatprep.subr.mxu0 0.0
        %1059 = vmatpush1.msra.mxu0 0.0
        %1060 = vmatprep.subr.mxu0 0.0
        %1061 = vmatpush1.msra.mxu0 0.0
        %1062 = vmatprep.subr.mxu0 0.0
        %1063 = vmatpush1.msra.mxu0 0.0
        %1064 = vmatprep.subr.mxu0 0.0
        %1065 = vmatpush1.msra.mxu0 0.0
        %1066 = vmatprep.subr.mxu0 0.0
        %1067 = vmatpush1.msra.mxu0 0.0
        %1068 = vmatprep.subr.mxu0 0.0
        %1069 = vmatpush1.msra.mxu0 0.0
        %1070 = vmatprep.subr.mxu0 0.0
        %1071 = vmatpush1.msra.mxu0 0.0
        %1072 = vmatprep.subr.mxu0 0.0
        %1073 = vmatpush1.msra.mxu0 0.0
        %1074 = vmatprep.subr.mxu0 0.0
        %1075 = vmatpush1.msra.mxu0 0.0
        %1076 = vmatprep.subr.mxu0 0.0
        %1077 = vmatpush1.msra.mxu0 0.0
        %1078 = vmatprep.subr.mxu0 0.0
        %1079 = vmatpush1.msra.mxu0 0.0
        %1080 = vmatprep.subr.mxu0 0.0
        %1081 = vmatpush1.msra.mxu0 0.0
        %1082 = vmatprep.subr.mxu0 0.0
        %1083 = vmatpush1.msra.mxu0 0.0
        %1084 = vmatprep.mubr.f32.mxu0 0.0
        %1085 = vmatmul.mubr.f32.gmra.mrb[0].mxu0 %v903
        %v1086 = vpop.f32.mrb[0].mxu0
        %v1087 = vadd.f32 %v1008, %v1086
        %v1088 = vpop.f32.mrb[0].mxu0
        %v1089 = vadd.f32 %v1012, %v1088
        %1090 = vdwg.mxu0
        %1091 = vmatprep.subr.mxu0 0.0
        %1092 = vmatpush1.msra.mxu0 %v908
        %1093 = vmatprep.subr.mxu0 0.0
        %1094 = vmatpush1.msra.mxu0 %v911
        %1095 = vmatprep.subr.mxu0 0.0
        %1096 = vmatpush1.msra.mxu0 %v914
        %1097 = vmatprep.subr.mxu0 0.0
        %1098 = vmatpush1.msra.mxu0 %v917
        %1099 = vmatprep.subr.mxu0 0.0
        %1100 = vmatpush1.msra.mxu0 %v920
        %1101 = vmatprep.subr.mxu0 0.0
        %1102 = vmatpush1.msra.mxu0 %v923
        %1103 = vmatprep.subr.mxu0 0.0
        %1104 = vmatpush1.msra.mxu0 %v926
        %1105 = vmatprep.subr.mxu0 0.0
        %1106 = vmatpush1.msra.mxu0 %v929
        %1107 = vmatprep.subr.mxu0 0.0
        %1108 = vmatpush1.msra.mxu0 %v932
        %1109 = vmatprep.subr.mxu0 0.0
        %1110 = vmatpush1.msra.mxu0 %v935
        %1111 = vmatprep.subr.mxu0 0.0
        %1112 = vmatpush1.msra.mxu0 %v938
        %1113 = vmatprep.subr.mxu0 0.0
        %1114 = vmatpush1.msra.mxu0 %v941
        %1115 = vmatprep.subr.mxu0 0.0
        %1116 = vmatpush1.msra.mxu0 %v944
        %1117 = vmatprep.subr.mxu0 0.0
        %1118 = vmatpush1.msra.mxu0 %v947
        %1119 = vmatprep.subr.mxu0 0.0
        %1120 = vmatpush1.msra.mxu0 %v950
        %1121 = vmatprep.subr.mxu0 0.0
        %1122 = vmatpush1.msra.mxu0 %v953
        %1123 = vmatprep.subr.mxu0 0.0
        %1124 = vmatpush1.msra.mxu0 0.0
        %1125 = vmatprep.subr.mxu0 0.0
        %1126 = vmatpush1.msra.mxu0 0.0
        %1127 = vmatprep.subr.mxu0 0.0
        %1128 = vmatpush1.msra.mxu0 0.0
        %1129 = vmatprep.subr.mxu0 0.0
        %1130 = vmatpush1.msra.mxu0 0.0
        %1131 = vmatprep.subr.mxu0 0.0
        %1132 = vmatpush1.msra.mxu0 0.0
        %1133 = vmatprep.subr.mxu0 0.0
        %1134 = vmatpush1.msra.mxu0 0.0
        %1135 = vmatprep.subr.mxu0 0.0
        %1136 = vmatpush1.msra.mxu0 0.0
        %1137 = vmatprep.subr.mxu0 0.0
        %1138 = vmatpush1.msra.mxu0 0.0
        %1139 = vmatprep.subr.mxu0 0.0
        %1140 = vmatpush1.msra.mxu0 0.0
        %1141 = vmatprep.subr.mxu0 0.0
        %1142 = vmatpush1.msra.mxu0 0.0
        %1143 = vmatprep.subr.mxu0 0.0
        %1144 = vmatpush1.msra.mxu0 0.0
        %1145 = vmatprep.subr.mxu0 0.0
        %1146 = vmatpush1.msra.mxu0 0.0
        %1147 = vmatprep.subr.mxu0 0.0
        %1148 = vmatpush1.msra.mxu0 0.0
        %1149 = vmatprep.subr.mxu0 0.0
        %1150 = vmatpush1.msra.mxu0 0.0
        %1151 = vmatprep.subr.mxu0 0.0
        %1152 = vmatpush1.msra.mxu0 0.0
        %1153 = vmatprep.subr.mxu0 0.0
        %1154 = vmatpush1.msra.mxu0 0.0
        %1155 = vmatprep.mubr.f32.mxu0 0.0
        %1156 = vmatmul.mubr.f32.gmra.mrb[0].mxu0 %v903
        %v1157 = vpop.f32.mrb[0].mxu0
        %v1158 = vadd.f32 %v1016, %v1157
        %v1159 = vpop.f32.mrb[0].mxu0
        %1160 = vdwg.mxu0
        %v1162 = vlaneseq
        %v1163 = vshrl.u32 %v1162, 7
        %v1164 = vsub.s32 0, %v1163
        %v1165 = vrot.slane %v1003, %v1164
        %v1166 = vlaneseq
        %v1167 = vshrl.u32 %v1166, 7
        %v1168 = vsub.s32 1, %v1167
        %v1169 = vrot.slane %v1003, %v1168
        %v1170 = vlaneseq
        %v1171 = vshrl.u32 %v1170, 7
        %v1172 = vsub.s32 2, %v1171
        %v1173 = vrot.slane %v1003, %v1172
        %1177 = vmatprep.subr.mxu0 %v955
        %1178 = vmatpush1.msra.mxu0 %v954
        %1179 = vmatprep.subr.mxu0 %v958
        %1180 = vmatpush1.msra.mxu0 %v957
        %1181 = vmatprep.subr.mxu0 %v961
        %1182 = vmatpush1.msra.mxu0 %v960
        %1183 = vmatprep.subr.mxu0 %v964
        %1184 = vmatpush1.msra.mxu0 %v963
        %1185 = vmatprep.subr.mxu0 %v967
        %1186 = vmatpush1.msra.mxu0 %v966
        %1187 = vmatprep.subr.mxu0 %v970
        %1188 = vmatpush1.msra.mxu0 %v969
        %1189 = vmatprep.subr.mxu0 %v973
        %1190 = vmatpush1.msra.mxu0 %v972
        %1191 = vmatprep.subr.mxu0 %v976
        %1192 = vmatpush1.msra.mxu0 %v975
        %1193 = vmatprep.subr.mxu0 %v979
        %1194 = vmatpush1.msra.mxu0 %v978
        %1195 = vmatprep.subr.mxu0 %v982
        %1196 = vmatpush1.msra.mxu0 %v981
        %1197 = vmatprep.subr.mxu0 %v985
        %1198 = vmatpush1.msra.mxu0 %v984
        %1199 = vmatprep.subr.mxu0 %v988
        %1200 = vmatpush1.msra.mxu0 %v987
        %1201 = vmatprep.subr.mxu0 %v991
        %1202 = vmatpush1.msra.mxu0 %v990
        %1203 = vmatprep.subr.mxu0 %v994
        %1204 = vmatpush1.msra.mxu0 %v993
        %1205 = vmatprep.subr.mxu0 %v997
        %1206 = vmatpush1.msra.mxu0 %v996
        %1207 = vmatprep.subr.mxu0 %v1000
        %1208 = vmatpush1.msra.mxu0 %v999
        %1209 = vmatprep.subr.mxu0 0.0
        %1210 = vmatpush1.msra.mxu0 0.0
        %1211 = vmatprep.subr.mxu0 0.0
        %1212 = vmatpush1.msra.mxu0 0.0
        %1213 = vmatprep.subr.mxu0 0.0
        %1214 = vmatpush1.msra.mxu0 0.0
        %1215 = vmatprep.subr.mxu0 0.0
        %1216 = vmatpush1.msra.mxu0 0.0
        %1217 = vmatprep.subr.mxu0 0.0
        %1218 = vmatpush1.msra.mxu0 0.0
        %1219 = vmatprep.subr.mxu0 0.0
        %1220 = vmatpush1.msra.mxu0 0.0
        %1221 = vmatprep.subr.mxu0 0.0
        %1222 = vmatpush1.msra.mxu0 0.0
        %1223 = vmatprep.subr.mxu0 0.0
        %1224 = vmatpush1.msra.mxu0 0.0
        %1225 = vmatprep.subr.mxu0 0.0
        %1226 = vmatpush1.msra.mxu0 0.0
        %1227 = vmatprep.subr.mxu0 0.0
        %1228 = vmatpush1.msra.mxu0 0.0
        %1229 = vmatprep.subr.mxu0 0.0
        %1230 = vmatpush1.msra.mxu0 0.0
        %1231 = vmatprep.subr.mxu0 0.0
        %1232 = vmatpush1.msra.mxu0 0.0
        %1233 = vmatprep.subr.mxu0 0.0
        %1234 = vmatpush1.msra.mxu0 0.0
        %1235 = vmatprep.subr.mxu0 0.0
        %1236 = vmatpush1.msra.mxu0 0.0
        %1237 = vmatprep.subr.mxu0 0.0
        %1238 = vmatpush1.msra.mxu0 0.0
        %1239 = vmatprep.subr.mxu0 0.0
        %1240 = vmatpush1.msra.mxu0 0.0
        %1241 = vmatprep.mubr.f32.mxu0 0.0
        %1242 = vmatmul.mubr.f32.gmra.mrb[0].mxu0 %v905
        %v1243 = vpop.f32.mrb[0].mxu0
        %v1244 = vadd.f32 %v1165, %v1243
        %v1245 = vpop.f32.mrb[0].mxu0
        %v1246 = vadd.f32 %v1169, %v1245
        %1247 = vdwg.mxu0
        %1248 = vmatprep.subr.mxu0 0.0
        %1249 = vmatpush1.msra.mxu0 %v956
        %1250 = vmatprep.subr.mxu0 0.0
        %1251 = vmatpush1.msra.mxu0 %v959
        %1252 = vmatprep.subr.mxu0 0.0
        %1253 = vmatpush1.msra.mxu0 %v962
        %1254 = vmatprep.subr.mxu0 0.0
        %1255 = vmatpush1.msra.mxu0 %v965
        %1256 = vmatprep.subr.mxu0 0.0
        %1257 = vmatpush1.msra.mxu0 %v968
        %1258 = vmatprep.subr.mxu0 0.0
        %1259 = vmatpush1.msra.mxu0 %v971
        %1260 = vmatprep.subr.mxu0 0.0
        %1261 = vmatpush1.msra.mxu0 %v974
        %1262 = vmatprep.subr.mxu0 0.0
        %1263 = vmatpush1.msra.mxu0 %v977
        %1264 = vmatprep.subr.mxu0 0.0
        %1265 = vmatpush1.msra.mxu0 %v980
        %1266 = vmatprep.subr.mxu0 0.0
        %1267 = vmatpush1.msra.mxu0 %v983
        %1268 = vmatprep.subr.mxu0 0.0
        %1269 = vmatpush1.msra.mxu0 %v986
        %1270 = vmatprep.subr.mxu0 0.0
        %1271 = vmatpush1.msra.mxu0 %v989
        %1272 = vmatprep.subr.mxu0 0.0
        %1273 = vmatpush1.msra.mxu0 %v992
        %1274 = vmatprep.subr.mxu0 0.0
        %1275 = vmatpush1.msra.mxu0 %v995
        %1276 = vmatprep.subr.mxu0 0.0
        %1277 = vmatpush1.msra.mxu0 %v998
        %1278 = vmatprep.subr.mxu0 0.0
        %1279 = vmatpush1.msra.mxu0 %v1001
        %1280 = vmatprep.subr.mxu0 0.0
        %1281 = vmatpush1.msra.mxu0 0.0
        %1282 = vmatprep.subr.mxu0 0.0
        %1283 = vmatpush1.msra.mxu0 0.0
        %1284 = vmatprep.subr.mxu0 0.0
        %1285 = vmatpush1.msra.mxu0 0.0
        %1286 = vmatprep.subr.mxu0 0.0
        %1287 = vmatpush1.msra.mxu0 0.0
        %1288 = vmatprep.subr.mxu0 0.0
        %1289 = vmatpush1.msra.mxu0 0.0
        %1290 = vmatprep.subr.mxu0 0.0
        %1291 = vmatpush1.msra.mxu0 0.0
        %1292 = vmatprep.subr.mxu0 0.0
        %1293 = vmatpush1.msra.mxu0 0.0
        %1294 = vmatprep.subr.mxu0 0.0
        %1295 = vmatpush1.msra.mxu0 0.0
        %1296 = vmatprep.subr.mxu0 0.0
        %1297 = vmatpush1.msra.mxu0 0.0
        %1298 = vmatprep.subr.mxu0 0.0
        %1299 = vmatpush1.msra.mxu0 0.0
        %1300 = vmatprep.subr.mxu0 0.0
        %1301 = vmatpush1.msra.mxu0 0.0
        %1302 = vmatprep.subr.mxu0 0.0
        %1303 = vmatpush1.msra.mxu0 0.0
        %1304 = vmatprep.subr.mxu0 0.0
        %1305 = vmatpush1.msra.mxu0 0.0
        %1306 = vmatprep.subr.mxu0 0.0
        %1307 = vmatpush1.msra.mxu0 0.0
        %1308 = vmatprep.subr.mxu0 0.0
        %1309 = vmatpush1.msra.mxu0 0.0
        %1310 = vmatprep.subr.mxu0 0.0
        %1311 = vmatpush1.msra.mxu0 0.0
        %1312 = vmatprep.mubr.f32.mxu0 0.0
        %1313 = vmatmul.mubr.f32.gmra.mrb[0].mxu0 %v905
        %v1314 = vpop.f32.mrb[0].mxu0
        %v1315 = vadd.f32 %v1173, %v1314
        %v1316 = vpop.f32.mrb[0].mxu0
        %1317 = vdwg.mxu0
        %v1318 = vadd.f32 %v1087, %v1244
        %v1319 = vxor.u32 %v1318, 2147483648
        %v1320 = vmul.f32 %v1319, 1.442695
        %v1321 = vpow.pop %v1320
        %v1322 = vadd.f32 %v1321, 1.0
        %v1323 = vrcp.pop %v1322
        %v1324 = vmul.f32 1.0, %v1323
        %v1325 = vadd.f32 %v1089, %v1246
        %v1326 = vxor.u32 %v1325, 2147483648
        %v1327 = vmul.f32 %v1326, 1.442695
        %v1328 = vpow.pop %v1327
        %v1329 = vadd.f32 %v1328, 1.0
        %v1330 = vrcp.pop %v1329
        %v1331 = vmul.f32 1.0, %v1330
        %v1332 = vmul.f32 %v1324, %v1315
        %v1333 = vadd.f32 %v1158, %v1332
        %v1334 = vtanh.pop %v1333
        %v1335 = vsub.f32 1.0, %v1331
        %v1336 = vmul.f32 %v1335, %v1334
        %v1337 = vmul.f32 %v1331, %v905
        %v1338 = vadd.f32 %v1336, %v1337
        %1339 = vst [vmem:[#allocation3] sm:$0xff] %v1338
        %p1340 = scmp.eq.s32.totalorder %s29, 7
        // Predicated region
        $region93: #{tpu_custom_call.1} parent=63 // pred_check
          %p1341 = pneg %p1340
        $region94: #{tpu_custom_call.1} parent=63 // pred_check_branch
          %1343 = sbr.rel (%p1341) target = $region96
        $region95: #{tpu_custom_call.1} parent=63 // pred_region
          %v1344 = vmax.f32 %v1338, 0.0
          %v1345 = vld [vmem:[#allocation13] sm:$0xff]
          %v1346 = vld [vmem:[#allocation13 + $0x8] sm:$0xff]
          %v1347 = vld [vmem:[#allocation13 + $0x10] sm:$0xff]
          %v1348 = vld [vmem:[#allocation13 + $0x18] sm:$0xff]
          %v1349 = vld [vmem:[#allocation13 + $0x20] sm:$0xff]
          %v1350 = vld [vmem:[#allocation13 + $0x28] sm:$0xff]
          %v1351 = vld [vmem:[#allocation13 + $0x30] sm:$0xff]
          %v1352 = vld [vmem:[#allocation13 + $0x38] sm:$0xff]
          %v1353 = vld [vmem:[#allocation13 + $0x40] sm:$0xff]
          %v1354 = vld [vmem:[#allocation13 + $0x48] sm:$0xff]
          %v1355 = vld [vmem:[#allocation13 + $0x50] sm:$0xff]
          %v1356 = vld [vmem:[#allocation13 + $0x58] sm:$0xff]
          %v1357 = vld [vmem:[#allocation13 + $0x60] sm:$0xff]
          %v1358 = vld [vmem:[#allocation13 + $0x68] sm:$0xff]
          %v1359 = vld [vmem:[#allocation13 + $0x70] sm:$0xff]
          %v1360 = vld [vmem:[#allocation13 + $0x78] sm:$0xff]
          %v1361 = vld [vmem:[%s10] sm:$0x1]
          %v1363 = vlaneseq
          %v1364 = vshrl.u32 %v1363, 7
          %v1365 = vsub.s32 0, %v1364
          %v1366 = vrot.slane %v1361, %v1365
          %1368 = vmatprep.subr.mxu0 0.0
          %1369 = vmatpush1.msra.mxu0 %v1345
          %1370 = vmatprep.subr.mxu0 0.0
          %1371 = vmatpush1.msra.mxu0 %v1346
          %1372 = vmatprep.subr.mxu0 0.0
          %1373 = vmatpush1.msra.mxu0 %v1347
          %1374 = vmatprep.subr.mxu0 0.0
          %1375 = vmatpush1.msra.mxu0 %v1348
          %1376 = vmatprep.subr.mxu0 0.0
          %1377 = vmatpush1.msra.mxu0 %v1349
          %1378 = vmatprep.subr.mxu0 0.0
          %1379 = vmatpush1.msra.mxu0 %v1350
          %1380 = vmatprep.subr.mxu0 0.0
          %1381 = vmatpush1.msra.mxu0 %v1351
          %1382 = vmatprep.subr.mxu0 0.0
          %1383 = vmatpush1.msra.mxu0 %v1352
          %1384 = vmatprep.subr.mxu0 0.0
          %1385 = vmatpush1.msra.mxu0 %v1353
          %1386 = vmatprep.subr.mxu0 0.0
          %1387 = vmatpush1.msra.mxu0 %v1354
          %1388 = vmatprep.subr.mxu0 0.0
          %1389 = vmatpush1.msra.mxu0 %v1355
          %1390 = vmatprep.subr.mxu0 0.0
          %1391 = vmatpush1.msra.mxu0 %v1356
          %1392 = vmatprep.subr.mxu0 0.0
          %1393 = vmatpush1.msra.mxu0 %v1357
          %1394 = vmatprep.subr.mxu0 0.0
          %1395 = vmatpush1.msra.mxu0 %v1358
          %1396 = vmatprep.subr.mxu0 0.0
          %1397 = vmatpush1.msra.mxu0 %v1359
          %1398 = vmatprep.subr.mxu0 0.0
          %1399 = vmatpush1.msra.mxu0 %v1360
          %1400 = vmatprep.subr.mxu0 0.0
          %1401 = vmatpush1.msra.mxu0 0.0
          %1402 = vmatprep.subr.mxu0 0.0
          %1403 = vmatpush1.msra.mxu0 0.0
          %1404 = vmatprep.subr.mxu0 0.0
          %1405 = vmatpush1.msra.mxu0 0.0
          %1406 = vmatprep.subr.mxu0 0.0
          %1407 = vmatpush1.msra.mxu0 0.0
          %1408 = vmatprep.subr.mxu0 0.0
          %1409 = vmatpush1.msra.mxu0 0.0
          %1410 = vmatprep.subr.mxu0 0.0
          %1411 = vmatpush1.msra.mxu0 0.0
          %1412 = vmatprep.subr.mxu0 0.0
          %1413 = vmatpush1.msra.mxu0 0.0
          %1414 = vmatprep.subr.mxu0 0.0
          %1415 = vmatpush1.msra.mxu0 0.0
          %1416 = vmatprep.subr.mxu0 0.0
          %1417 = vmatpush1.msra.mxu0 0.0
          %1418 = vmatprep.subr.mxu0 0.0
          %1419 = vmatpush1.msra.mxu0 0.0
          %1420 = vmatprep.subr.mxu0 0.0
          %1421 = vmatpush1.msra.mxu0 0.0
          %1422 = vmatprep.subr.mxu0 0.0
          %1423 = vmatpush1.msra.mxu0 0.0
          %1424 = vmatprep.subr.mxu0 0.0
          %1425 = vmatpush1.msra.mxu0 0.0
          %1426 = vmatprep.subr.mxu0 0.0
          %1427 = vmatpush1.msra.mxu0 0.0
          %1428 = vmatprep.subr.mxu0 0.0
          %1429 = vmatpush1.msra.mxu0 0.0
          %1430 = vmatprep.subr.mxu0 0.0
          %1431 = vmatpush1.msra.mxu0 0.0
          %1432 = vmatprep.mubr.f32.mxu0 0.0
          %1433 = vmatmul.mubr.f32.gmra.mrb[0].mxu0 %v1344
          %v1434 = vpop.f32.mrb[0].mxu0
          %v1435 = vadd.f32 %v1366, %v1434
          %v1436 = vpop.f32.mrb[0].mxu0
          %1437 = vdwg.mxu0
          %1438 = vst [vmem:[#allocation15] sm:$0xff] %v1435
        $region96: #{tpu_custom_call.1} parent=63 // pred_fallthru
          _
        // Predicated region
        $region97: #{tpu_custom_call.1} parent=63 // pred_check
          %p1439 = pneg %p278
        $region98: #{tpu_custom_call.1} parent=63 // pred_check_branch
          %1441 = sbr.rel (%p1439) target = $region100
        $region99: #{tpu_custom_call.1} parent=63 // pred_region
          %s1443 = ssub.s32 128, 128
          %1444 = vsyncadd [#allocation6], %s1443
          %s1446 = sshll.u32 [#allocation15], 4
          %s1447 = int_to_ptr.vmem [resolvable:$true] %s1446
          %1449 = dma.vmem_to_hbm [thread:$0]  %s1447, 128, %s11, [#allocation6]
        $region100: #{tpu_custom_call.1} parent=63 // pred_fallthru
          _
        // Predicated region
        $region101: #{tpu_custom_call.1} parent=63 // pred_check
          %p1450 = pneg %p278
        $region102: #{tpu_custom_call.1} parent=63 // pred_check_branch
          %1452 = sbr.rel (%p1450) target = $region104
        $region103: #{tpu_custom_call.1} parent=63 // pred_region
          %1453 = dma.done [#allocation6], 128
        $region104: #{tpu_custom_call.1} parent=63 // pred_fallthru
          _
      $region64: #{tpu_custom_call.1} parent=5 // pred_fallthru
        _
      %p1454 = scmp.le.s32.totalorder 2, %s24
      // Predicated region
      $region105: #{tpu_custom_call.1} parent=5 // pred_check
        %p1455 = pneg %p1454
      $region106: #{tpu_custom_call.1} parent=5 // pred_check_branch
        %1457 = sbr.rel (%p1455) target = $region108
      $region107: #{tpu_custom_call.1} parent=5 // pred_region
        %s1458 = ssub.s32 %s24, 2
      $region108: #{tpu_custom_call.1} parent=5 // pred_fallthru
        _
    $region6: #{tpu_custom_call.1} parent=1 // loop_footer
      %s28 = sadd.s32 1, %s24
    $region7: #{tpu_custom_call.1} parent=1 // loop_footer_branch
      %23 = sbr.rel target = $region3
    $region8: #{tpu_custom_call.1} parent=1 // loop_exit
      _
    %1459 = vsyncpa [#allocation5], 1
    %s1460 = scalar_lea.sflag [#allocation5], 1
    %1461 = vsyncpa %s1460, 1
    %1462 = vsyncpa [#allocation8], 1
    %1463 = vsyncpa [#allocation11], 1
    %1464 = vsyncpa [#allocation14], 1
    %1465 = vsyncpa [#allocation6], 1
    %s1466 = scalar_lea.sflag [#allocation6], 1
    %1467 = vsyncpa %s1466, 1

</llo_original>
